<compile_context>
chip_gen: v5e
topology: v5e:2x2
jax: 0.10.0
libtpu: 0.0.40
codegen_flags: <defaults>
</compile_context>

<pallas_src>
import functools

import jax
import jax.numpy as jnp
from jax.experimental import pallas as pl
from jax.experimental.pallas import tpu as pltpu


def _resnet_block_kernel(x_ref, w1_ref, w2_ref, s1_ref, t1_ref, s2_ref, t2_ref,
                         out_ref, xp_ref, hp_ref, *, H, W, C):
    """Fused ResNet block for one batch element (NHWC, channels on lanes).

    x_ref  : (H, W, C)      input activations (compute dtype, e.g. bf16)
    w*_ref : (9, C, C)      conv taps, tap t = 3*dy + dx, each (C_in, C_out)
    s*/t*  : (1, C)         folded BatchNorm scale / shift (f32)
    out_ref: (H, W, C)      f32 output
    xp_ref : (H+2, W+2, C)  VMEM scratch: reflection-padded x
    hp_ref : (H+2, W+2, C)  VMEM scratch: reflection-padded conv1 output
    """
    f32 = jnp.float32

    def pad_row(row):
        # 1-pixel reflection pad along W: [row[1], row[0..W-1], row[W-2]].
        return jnp.concatenate([row[1:2], row, row[W - 2:W - 1]], axis=0)

    # ---- ReflectionPad2d(1) of x, built entirely in VMEM (no XLA pad pass).
    def pad_x_row(p, carry):
        s = jnp.abs(p - 1)                               # top reflection
        s = jnp.where(s > H - 1, 2 * (H - 1) - s, s)     # bottom reflection
        xp_ref[p] = pad_row(x_ref[s]).astype(xp_ref.dtype)
        return carry
    jax.lax.fori_loop(0, H + 2, pad_x_row, 0)

    scale1, shift1 = s1_ref[...], t1_ref[...]
    scale2, shift2 = s2_ref[...], t2_ref[...]

    # ---- conv1 (3x3 = 9 MXU taps) + folded BN1 + ReLU, one output row per step.
    #      Accumulator stays a single (W, C) f32 row (no spills at real sizes).
    def conv1_row(i, carry):
        acc = jnp.zeros((W, C), f32)
        for dy in range(3):
            row = xp_ref[i + dy]                         # (W+2, C)
            for dx in range(3):
                acc += jnp.dot(row[dx:dx + W, :], w1_ref[3 * dy + dx],
                               preferred_element_type=f32)
        h = jnp.maximum(acc * scale1 + shift1, 0.0)      # f32 epilogue
        # Dropout(0.5) in eval mode is the identity.
        hp_ref[i + 1] = pad_row(h).astype(hp_ref.dtype)  # store W-padded h row
        return carry
    jax.lax.fori_loop(0, H, conv1_row, 0)

    # ---- top / bottom reflection rows of padded h (columns already padded).
    hp_ref[0] = hp_ref[2]            # h row 1
    hp_ref[H + 1] = hp_ref[H - 1]    # h row H-2

    # ---- conv2 (3x3) + folded BN2 + residual add.
    def conv2_row(i, carry):
        acc = jnp.zeros((W, C), f32)
        for dy in range(3):
            row = hp_ref[i + dy]
            for dx in range(3):
                acc += jnp.dot(row[dx:dx + W, :], w2_ref[3 * dy + dx],
                               preferred_element_type=f32)
        y = acc * scale2 + shift2 + x_ref[i].astype(f32)
        out_ref[i] = y.astype(out_ref.dtype)
        return carry
    jax.lax.fori_loop(0, H, conv2_row, 0)


def resnet_block(x_nhwc, w1_hwio, scale1, shift1, w2_hwio, scale2, shift2,
                 *, compute_dtype=jnp.bfloat16):
    """x: (B,H,W,C) NHWC; w*: (3,3,C,C) HWIO; scale/shift: (C,) folded BN."""
    B, H, W, C = x_nhwc.shape
    assert H >= 2 and W >= 2, "ReflectionPad2d(1) needs H, W >= 2"

    # Matmul inputs in compute dtype (bf16 on v6e/v7x); BN affine stays f32.
    xc = x_nhwc.astype(compute_dtype)
    w1 = w1_hwio.reshape(9, C, C).astype(compute_dtype)   # tap-major, contiguous
    w2 = w2_hwio.reshape(9, C, C).astype(compute_dtype)
    s1 = scale1.reshape(1, C).astype(jnp.float32)
    t1 = shift1.reshape(1, C).astype(jnp.float32)
    s2 = scale2.reshape(1, C).astype(jnp.float32)
    t2 = shift2.reshape(1, C).astype(jnp.float32)

    kernel = functools.partial(_resnet_block_kernel, H=H, W=W, C=C)
    wspec = pl.BlockSpec((9, C, C), lambda b: (0, 0, 0))      # VMEM-resident
    cspec = pl.BlockSpec((1, C), lambda b: (0, 0))

    return pl.pallas_call(
        kernel,
        out_shape=jax.ShapeDtypeStruct((B, H, W, C), jnp.float32),
        grid=(B,),
        in_specs=[
            pl.BlockSpec((None, H, W, C), lambda b: (b, 0, 0, 0)),  # x
            wspec, wspec,                                           # w1, w2
            cspec, cspec, cspec, cspec,                             # BN affine
        ],
        out_specs=pl.BlockSpec((None, H, W, C), lambda b: (b, 0, 0, 0)),
        scratch_shapes=[
            pltpu.VMEM((H + 2, W + 2, C), compute_dtype),   # padded x
            pltpu.VMEM((H + 2, W + 2, C), compute_dtype),   # padded h
        ],
        compiler_params=pltpu.CompilerParams(dimension_semantics=("parallel",)),
    )(xc, w1, w2, s1, t1, s2, t2)


def fold_bn(conv_bias, gamma, beta, running_mean, running_var, eps=1e-5):
    inv = gamma / jnp.sqrt(running_var + eps)
    scale = inv
    shift = (conv_bias - running_mean) * inv + beta
    return scale, shift


def reflect_pad1(x_nhwc):
    return jnp.pad(x_nhwc, ((0, 0), (1, 1), (1, 1), (0, 0)), mode="reflect")


def _ref_forward(x, w1_hwio, scale1, shift1, w2_hwio, scale2, shift2,
                 *, compute_dtype):
    """Pure-JAX reference (lax.conv) with the same quantization points as the kernel."""
    def conv(a, w):
        return jax.lax.conv_general_dilated(
            a, w.astype(compute_dtype), (1, 1), "VALID",
            dimension_numbers=("NHWC", "HWIO", "NHWC"),
            preferred_element_type=jnp.float32)
    xc = x.astype(compute_dtype)
    h = jnp.maximum(conv(reflect_pad1(xc), w1_hwio) * scale1 + shift1, 0.0)
    hp = reflect_pad1(h.astype(compute_dtype))
    return xc.astype(jnp.float32) + conv(hp, w2_hwio) * scale2 + shift2


if __name__ == "__main__":
    B, C, H, W = 2, 4, 16, 16
    key = jax.random.PRNGKey(0)
    ks = jax.random.split(key, 12)

    # PyTorch-convention input (NCHW) and conv weights (OIHW).
    x_nchw = jax.random.normal(ks[0], (B, C, H, W), jnp.float32)
    w1_oihw = jax.random.normal(ks[1], (C, C, 3, 3), jnp.float32) * 0.2
    b1 = jax.random.normal(ks[2], (C,), jnp.float32) * 0.1
    w2_oihw = jax.random.normal(ks[3], (C, C, 3, 3), jnp.float32) * 0.2
    b2 = jax.random.normal(ks[4], (C,), jnp.float32) * 0.1

    # BatchNorm parameters / running stats (deterministic, non-trivial).
    gamma1 = 1.0 + 0.1 * jax.random.normal(ks[5], (C,), jnp.float32)
    beta1 = 0.1 * jax.random.normal(ks[6], (C,), jnp.float32)
    mean1 = 0.1 * jax.random.normal(ks[7], (C,), jnp.float32)
    var1 = jax.random.uniform(ks[8], (C,), jnp.float32, 0.5, 1.5)
    gamma2 = 1.0 + 0.1 * jax.random.normal(ks[9], (C,), jnp.float32)
    beta2 = 0.1 * jax.random.normal(ks[10], (C,), jnp.float32)
    mean2 = 0.1 * jax.random.normal(ks[11], (C,), jnp.float32)
    var2 = jnp.linspace(0.8, 1.2, C).astype(jnp.float32)

    # Glue: NCHW -> NHWC, OIHW -> HWIO, fold BN (+ conv bias) into scale/shift.
    x = jnp.transpose(x_nchw, (0, 2, 3, 1))
    w1 = jnp.transpose(w1_oihw, (2, 3, 1, 0))
    w2 = jnp.transpose(w2_oihw, (2, 3, 1, 0))
    scale1, shift1 = fold_bn(b1, gamma1, beta1, mean1, var1)
    scale2, shift2 = fold_bn(b2, gamma2, beta2, mean2, var2)

    # --- f32 path: tight numerical check against the lax.conv reference.
    out32 = resnet_block(x, w1, scale1, shift1, w2, scale2, shift2,
                         compute_dtype=jnp.float32)
    out32 = jax.block_until_ready(out32)
    ref32 = _ref_forward(x, w1, scale1, shift1, w2, scale2, shift2,
                         compute_dtype=jnp.float32)
    assert out32.shape == (B, H, W, C)
    assert jnp.allclose(out32, ref32, atol=1e-4, rtol=1e-4), "f32 mismatch vs reference"

    # --- bf16 path (recommended on v6e/v7x): bf16 matmul inputs, f32 accumulation
    # and f32 epilogue. Looser tolerance only because the recomputed conv1 output
    # is quantized to bf16 independently in kernel and reference (a single-ulp
    # rounding flip of one intermediate can perturb a few outputs by ~1e-2);
    # any real bug (padding / taps / BN fold) would produce O(1) errors.
    out16 = resnet_block(x, w1, scale1, shift1, w2, scale2, shift2,
                         compute_dtype=jnp.bfloat16)
    out16 = jax.block_until_ready(out16)
    ref16 = _ref_forward(x, w1, scale1, shift1, w2, scale2, shift2,
                         compute_dtype=jnp.bfloat16)
    assert jnp.allclose(out16, ref16, atol=5e-2, rtol=5e-2), "bf16 mismatch vs reference"

    print("KERNEL_OK")
</pallas_src>

<mosaic_0001>
module attributes {stable_mosaic.version = 11 : i64} {
  func.func @_resnet_block_kernel(%arg0: i32, %arg1: memref<1x16x16x4xf32, #tpu.memory_space<vmem>>, %arg2: memref<9x4x4xf32, #tpu.memory_space<vmem>>, %arg3: memref<9x4x4xf32, #tpu.memory_space<vmem>>, %arg4: memref<1x4xf32, #tpu.memory_space<vmem>>, %arg5: memref<1x4xf32, #tpu.memory_space<vmem>>, %arg6: memref<1x4xf32, #tpu.memory_space<vmem>>, %arg7: memref<1x4xf32, #tpu.memory_space<vmem>>, %arg8: memref<1x16x16x4xf32, #tpu.memory_space<vmem>>, %arg9: memref<18x18x4xf32, #tpu.memory_space<vmem>>, %arg10: memref<18x18x4xf32, #tpu.memory_space<vmem>>) attributes {dimension_semantics = [#tpu.dimension_semantics<parallel>], iteration_bounds = array<i64: 2>, scalar_prefetch = 0 : i64, scratch_operands = 2 : i64, tpu.core_type = #tpu.core_type<tc>, window_params = [{transform_indices = @transform_0, window_bounds = array<i64: 1, 16, 16, 4>}, {pipeline_mode = #tpu.pipeline_mode<synchronous>, transform_indices = @transform_1, window_bounds = array<i64: 9, 4, 4>}, {pipeline_mode = #tpu.pipeline_mode<synchronous>, transform_indices = @transform_2, window_bounds = array<i64: 9, 4, 4>}, {pipeline_mode = #tpu.pipeline_mode<synchronous>, transform_indices = @transform_3, window_bounds = array<i64: 1, 4>}, {pipeline_mode = #tpu.pipeline_mode<synchronous>, transform_indices = @transform_4, window_bounds = array<i64: 1, 4>}, {pipeline_mode = #tpu.pipeline_mode<synchronous>, transform_indices = @transform_5, window_bounds = array<i64: 1, 4>}, {pipeline_mode = #tpu.pipeline_mode<synchronous>, transform_indices = @transform_6, window_bounds = array<i64: 1, 4>}, {transform_indices = @transform_7, window_bounds = array<i64: 1, 16, 16, 4>}]} {
    %c0_i32 = arith.constant 0 : i32
    %c18_i32 = arith.constant 18 : i32
    %0 = arith.addi %c0_i32, %c18_i32 : i32
    %c1_i32 = arith.constant 1 : i32
    scf.for %arg11 = %c0_i32 to %0 step %c1_i32  : i32 {
      %c1_i32_24 = arith.constant 1 : i32
      %17 = arith.subi %arg11, %c1_i32_24 : i32
      %18 = math.absi %17 : i32
      %c15_i32 = arith.constant 15 : i32
      %19 = arith.cmpi sgt, %18, %c15_i32 : i32
      %c30_i32 = arith.constant 30 : i32
      %20 = arith.subi %c30_i32, %18 : i32
      %21 = arith.select %19, %20, %18 : i32
      %c0_25 = arith.constant 0 : index
      %22 = arith.index_cast %21 : i32 to index
      %c0_26 = arith.constant 0 : index
      %c0_27 = arith.constant 0 : index
      %23 = vector.load %arg1[%c0_25, %22, %c0_26, %c0_27] : memref<1x16x16x4xf32, #tpu.memory_space<vmem>>, vector<1x1x16x4xf32>
      %24 = vector.shape_cast %23 : vector<1x1x16x4xf32> to vector<16x4xf32>
      %25 = vector.extract_strided_slice %24 {offsets = [1, 0], sizes = [1, 4], strides = [1, 1]} : vector<16x4xf32> to vector<1x4xf32>
      %26 = vector.extract_strided_slice %24 {offsets = [14, 0], sizes = [1, 4], strides = [1, 1]} : vector<16x4xf32> to vector<1x4xf32>
      %27 = tpu.concatenate %25, %24, %26 in 0 : vector<1x4xf32>, vector<16x4xf32>, vector<1x4xf32> -> vector<18x4xf32>
      %28 = arith.index_cast %arg11 : i32 to index
      %c0_28 = arith.constant 0 : index
      %c0_29 = arith.constant 0 : index
      %29 = vector.load %arg9[%28, %c0_28, %c0_29] : memref<18x18x4xf32, #tpu.memory_space<vmem>>, vector<1x18x4xf32>
      %30 = vector.shape_cast %29 : vector<1x18x4xf32> to vector<18x4xf32>
      %31 = vector.shape_cast %27 : vector<18x4xf32> to vector<1x18x4xf32>
      tpu.vector_store %arg9[%28, %c0_28, %c0_29], %31 {strides = array<i32>} : memref<18x18x4xf32, #tpu.memory_space<vmem>>, vector<1x18x4xf32>,
    }
    %c18_i32_0 = arith.constant 18 : i32
    %c0 = arith.constant 0 : index
    %c0_1 = arith.constant 0 : index
    %1 = vector.load %arg4[%c0, %c0_1] : memref<1x4xf32, #tpu.memory_space<vmem>>, vector<1x4xf32>
    %c0_2 = arith.constant 0 : index
    %c0_3 = arith.constant 0 : index
    %2 = vector.load %arg5[%c0_2, %c0_3] : memref<1x4xf32, #tpu.memory_space<vmem>>, vector<1x4xf32>
    %c0_4 = arith.constant 0 : index
    %c0_5 = arith.constant 0 : index
    %3 = vector.load %arg6[%c0_4, %c0_5] : memref<1x4xf32, #tpu.memory_space<vmem>>, vector<1x4xf32>
    %c0_6 = arith.constant 0 : index
    %c0_7 = arith.constant 0 : index
    %4 = vector.load %arg7[%c0_6, %c0_7] : memref<1x4xf32, #tpu.memory_space<vmem>>, vector<1x4xf32>
    %c0_i32_8 = arith.constant 0 : i32
    %c16_i32 = arith.constant 16 : i32
    %5 = arith.addi %c0_i32_8, %c16_i32 : i32
    %c1_i32_9 = arith.constant 1 : i32
    scf.for %arg11 = %c0_i32_8 to %5 step %c1_i32_9  : i32 {
      %cst = arith.constant 0.000000e+00 : f32
      %17 = vector.broadcast %cst : f32 to vector<16x4xf32>
      %c0_i32_24 = arith.constant 0 : i32
      %18 = arith.addi %arg11, %c0_i32_24 : i32
      %19 = arith.index_cast %18 : i32 to index
      %c0_25 = arith.constant 0 : index
      %c0_26 = arith.constant 0 : index
      %20 = vector.load %arg9[%19, %c0_25, %c0_26] : memref<18x18x4xf32, #tpu.memory_space<vmem>>, vector<1x18x4xf32>
      %21 = vector.shape_cast %20 : vector<1x18x4xf32> to vector<18x4xf32>
      %22 = vector.extract_strided_slice %21 {offsets = [0, 0], sizes = [16, 4], strides = [1, 1]} : vector<18x4xf32> to vector<16x4xf32>
      %c0_27 = arith.constant 0 : index
      %c0_28 = arith.constant 0 : index
      %c0_29 = arith.constant 0 : index
      %23 = vector.load %arg2[%c0_27, %c0_28, %c0_29] : memref<9x4x4xf32, #tpu.memory_space<vmem>>, vector<1x4x4xf32>
      %24 = vector.shape_cast %23 : vector<1x4x4xf32> to vector<4x4xf32>
      %cst_30 = arith.constant dense<0.000000e+00> : vector<16x4xf32>
      %25 = tpu.matmul %22, %24, %cst_30 {dimension_numbers = #tpu.dot_dimension_numbers<[1], [0], [0], [1], [0, 0, 1, 1], [], []>} : vector<16x4xf32>, vector<4x4xf32>, vector<16x4xf32> -> vector<16x4xf32>
      %26 = arith.addf %17, %25 : vector<16x4xf32>
      %27 = vector.extract_strided_slice %21 {offsets = [1, 0], sizes = [16, 4], strides = [1, 1]} : vector<18x4xf32> to vector<16x4xf32>
      %c1 = arith.constant 1 : index
      %c0_31 = arith.constant 0 : index
      %c0_32 = arith.constant 0 : index
      %28 = vector.load %arg2[%c1, %c0_31, %c0_32] : memref<9x4x4xf32, #tpu.memory_space<vmem>>, vector<1x4x4xf32>
      %29 = vector.shape_cast %28 : vector<1x4x4xf32> to vector<4x4xf32>
      %cst_33 = arith.constant dense<0.000000e+00> : vector<16x4xf32>
      %30 = tpu.matmul %27, %29, %cst_33 {dimension_numbers = #tpu.dot_dimension_numbers<[1], [0], [0], [1], [0, 0, 1, 1], [], []>} : vector<16x4xf32>, vector<4x4xf32>, vector<16x4xf32> -> vector<16x4xf32>
      %31 = arith.addf %26, %30 : vector<16x4xf32>
      %32 = vector.extract_strided_slice %21 {offsets = [2, 0], sizes = [16, 4], strides = [1, 1]} : vector<18x4xf32> to vector<16x4xf32>
      %c2_34 = arith.constant 2 : index
      %c0_35 = arith.constant 0 : index
      %c0_36 = arith.constant 0 : index
      %33 = vector.load %arg2[%c2_34, %c0_35, %c0_36] : memref<9x4x4xf32, #tpu.memory_space<vmem>>, vector<1x4x4xf32>
      %34 = vector.shape_cast %33 : vector<1x4x4xf32> to vector<4x4xf32>
      %cst_37 = arith.constant dense<0.000000e+00> : vector<16x4xf32>
      %35 = tpu.matmul %32, %34, %cst_37 {dimension_numbers = #tpu.dot_dimension_numbers<[1], [0], [0], [1], [0, 0, 1, 1], [], []>} : vector<16x4xf32>, vector<4x4xf32>, vector<16x4xf32> -> vector<16x4xf32>
      %36 = arith.addf %31, %35 : vector<16x4xf32>
      %c1_i32_38 = arith.constant 1 : i32
      %37 = arith.addi %arg11, %c1_i32_38 : i32
      %38 = arith.index_cast %37 : i32 to index
      %c0_39 = arith.constant 0 : index
      %c0_40 = arith.constant 0 : index
      %39 = vector.load %arg9[%38, %c0_39, %c0_40] : memref<18x18x4xf32, #tpu.memory_space<vmem>>, vector<1x18x4xf32>
      %40 = vector.shape_cast %39 : vector<1x18x4xf32> to vector<18x4xf32>
      %41 = vector.extract_strided_slice %40 {offsets = [0, 0], sizes = [16, 4], strides = [1, 1]} : vector<18x4xf32> to vector<16x4xf32>
      %c3 = arith.constant 3 : index
      %c0_41 = arith.constant 0 : index
      %c0_42 = arith.constant 0 : index
      %42 = vector.load %arg2[%c3, %c0_41, %c0_42] : memref<9x4x4xf32, #tpu.memory_space<vmem>>, vector<1x4x4xf32>
      %43 = vector.shape_cast %42 : vector<1x4x4xf32> to vector<4x4xf32>
      %cst_43 = arith.constant dense<0.000000e+00> : vector<16x4xf32>
      %44 = tpu.matmul %41, %43, %cst_43 {dimension_numbers = #tpu.dot_dimension_numbers<[1], [0], [0], [1], [0, 0, 1, 1], [], []>} : vector<16x4xf32>, vector<4x4xf32>, vector<16x4xf32> -> vector<16x4xf32>
      %45 = arith.addf %36, %44 : vector<16x4xf32>
      %46 = vector.extract_strided_slice %40 {offsets = [1, 0], sizes = [16, 4], strides = [1, 1]} : vector<18x4xf32> to vector<16x4xf32>
      %c4 = arith.constant 4 : index
      %c0_44 = arith.constant 0 : index
      %c0_45 = arith.constant 0 : index
      %47 = vector.load %arg2[%c4, %c0_44, %c0_45] : memref<9x4x4xf32, #tpu.memory_space<vmem>>, vector<1x4x4xf32>
      %48 = vector.shape_cast %47 : vector<1x4x4xf32> to vector<4x4xf32>
      %cst_46 = arith.constant dense<0.000000e+00> : vector<16x4xf32>
      %49 = tpu.matmul %46, %48, %cst_46 {dimension_numbers = #tpu.dot_dimension_numbers<[1], [0], [0], [1], [0, 0, 1, 1], [], []>} : vector<16x4xf32>, vector<4x4xf32>, vector<16x4xf32> -> vector<16x4xf32>
      %50 = arith.addf %45, %49 : vector<16x4xf32>
      %51 = vector.extract_strided_slice %40 {offsets = [2, 0], sizes = [16, 4], strides = [1, 1]} : vector<18x4xf32> to vector<16x4xf32>
      %c5 = arith.constant 5 : index
      %c0_47 = arith.constant 0 : index
      %c0_48 = arith.constant 0 : index
      %52 = vector.load %arg2[%c5, %c0_47, %c0_48] : memref<9x4x4xf32, #tpu.memory_space<vmem>>, vector<1x4x4xf32>
      %53 = vector.shape_cast %52 : vector<1x4x4xf32> to vector<4x4xf32>
      %cst_49 = arith.constant dense<0.000000e+00> : vector<16x4xf32>
      %54 = tpu.matmul %51, %53, %cst_49 {dimension_numbers = #tpu.dot_dimension_numbers<[1], [0], [0], [1], [0, 0, 1, 1], [], []>} : vector<16x4xf32>, vector<4x4xf32>, vector<16x4xf32> -> vector<16x4xf32>
      %55 = arith.addf %50, %54 : vector<16x4xf32>
      %c2_i32 = arith.constant 2 : i32
      %56 = arith.addi %arg11, %c2_i32 : i32
      %57 = arith.index_cast %56 : i32 to index
      %c0_50 = arith.constant 0 : index
      %c0_51 = arith.constant 0 : index
      %58 = vector.load %arg9[%57, %c0_50, %c0_51] : memref<18x18x4xf32, #tpu.memory_space<vmem>>, vector<1x18x4xf32>
      %59 = vector.shape_cast %58 : vector<1x18x4xf32> to vector<18x4xf32>
      %60 = vector.extract_strided_slice %59 {offsets = [0, 0], sizes = [16, 4], strides = [1, 1]} : vector<18x4xf32> to vector<16x4xf32>
      %c6 = arith.constant 6 : index
      %c0_52 = arith.constant 0 : index
      %c0_53 = arith.constant 0 : index
      %61 = vector.load %arg2[%c6, %c0_52, %c0_53] : memref<9x4x4xf32, #tpu.memory_space<vmem>>, vector<1x4x4xf32>
      %62 = vector.shape_cast %61 : vector<1x4x4xf32> to vector<4x4xf32>
      %cst_54 = arith.constant dense<0.000000e+00> : vector<16x4xf32>
      %63 = tpu.matmul %60, %62, %cst_54 {dimension_numbers = #tpu.dot_dimension_numbers<[1], [0], [0], [1], [0, 0, 1, 1], [], []>} : vector<16x4xf32>, vector<4x4xf32>, vector<16x4xf32> -> vector<16x4xf32>
      %64 = arith.addf %55, %63 : vector<16x4xf32>
      %65 = vector.extract_strided_slice %59 {offsets = [1, 0], sizes = [16, 4], strides = [1, 1]} : vector<18x4xf32> to vector<16x4xf32>
      %c7 = arith.constant 7 : index
      %c0_55 = arith.constant 0 : index
      %c0_56 = arith.constant 0 : index
      %66 = vector.load %arg2[%c7, %c0_55, %c0_56] : memref<9x4x4xf32, #tpu.memory_space<vmem>>, vector<1x4x4xf32>
      %67 = vector.shape_cast %66 : vector<1x4x4xf32> to vector<4x4xf32>
      %cst_57 = arith.constant dense<0.000000e+00> : vector<16x4xf32>
      %68 = tpu.matmul %65, %67, %cst_57 {dimension_numbers = #tpu.dot_dimension_numbers<[1], [0], [0], [1], [0, 0, 1, 1], [], []>} : vector<16x4xf32>, vector<4x4xf32>, vector<16x4xf32> -> vector<16x4xf32>
      %69 = arith.addf %64, %68 : vector<16x4xf32>
      %70 = vector.extract_strided_slice %59 {offsets = [2, 0], sizes = [16, 4], strides = [1, 1]} : vector<18x4xf32> to vector<16x4xf32>
      %c8 = arith.constant 8 : index
      %c0_58 = arith.constant 0 : index
      %c0_59 = arith.constant 0 : index
      %71 = vector.load %arg2[%c8, %c0_58, %c0_59] : memref<9x4x4xf32, #tpu.memory_space<vmem>>, vector<1x4x4xf32>
      %72 = vector.shape_cast %71 : vector<1x4x4xf32> to vector<4x4xf32>
      %cst_60 = arith.constant dense<0.000000e+00> : vector<16x4xf32>
      %73 = tpu.matmul %70, %72, %cst_60 {dimension_numbers = #tpu.dot_dimension_numbers<[1], [0], [0], [1], [0, 0, 1, 1], [], []>} : vector<16x4xf32>, vector<4x4xf32>, vector<16x4xf32> -> vector<16x4xf32>
      %74 = arith.addf %69, %73 : vector<16x4xf32>
      %75 = vector.broadcast %1 : vector<1x4xf32> to vector<16x4xf32>
      %76 = arith.mulf %74, %75 : vector<16x4xf32>
      %77 = vector.broadcast %2 : vector<1x4xf32> to vector<16x4xf32>
      %78 = arith.addf %76, %77 : vector<16x4xf32>
      %cst_61 = arith.constant 0.000000e+00 : f32
      %79 = vector.broadcast %cst_61 : f32 to vector<16x4xf32>
      %80 = arith.maximumf %78, %79 : vector<16x4xf32>
      %81 = vector.extract_strided_slice %80 {offsets = [1, 0], sizes = [1, 4], strides = [1, 1]} : vector<16x4xf32> to vector<1x4xf32>
      %82 = vector.extract_strided_slice %80 {offsets = [14, 0], sizes = [1, 4], strides = [1, 1]} : vector<16x4xf32> to vector<1x4xf32>
      %83 = tpu.concatenate %81, %80, %82 in 0 : vector<1x4xf32>, vector<16x4xf32>, vector<1x4xf32> -> vector<18x4xf32>
      %c1_i32_62 = arith.constant 1 : i32
      %84 = arith.addi %arg11, %c1_i32_62 : i32
      %85 = arith.index_cast %84 : i32 to index
      %c0_63 = arith.constant 0 : index
      %c0_64 = arith.constant 0 : index
      %86 = vector.load %arg10[%85, %c0_63, %c0_64] : memref<18x18x4xf32, #tpu.memory_space<vmem>>, vector<1x18x4xf32>
      %87 = vector.shape_cast %86 : vector<1x18x4xf32> to vector<18x4xf32>
      %88 = vector.shape_cast %83 : vector<18x4xf32> to vector<1x18x4xf32>
      tpu.vector_store %arg10[%85, %c0_63, %c0_64], %88 {strides = array<i32>} : memref<18x18x4xf32, #tpu.memory_space<vmem>>, vector<1x18x4xf32>,
    }
    %c16_i32_10 = arith.constant 16 : i32
    %c2 = arith.constant 2 : index
    %c0_11 = arith.constant 0 : index
    %c0_12 = arith.constant 0 : index
    %6 = vector.load %arg10[%c2, %c0_11, %c0_12] : memref<18x18x4xf32, #tpu.memory_space<vmem>>, vector<1x18x4xf32>
    %7 = vector.shape_cast %6 : vector<1x18x4xf32> to vector<18x4xf32>
    %c0_13 = arith.constant 0 : index
    %c0_14 = arith.constant 0 : index
    %c0_15 = arith.constant 0 : index
    %8 = vector.load %arg10[%c0_13, %c0_14, %c0_15] : memref<18x18x4xf32, #tpu.memory_space<vmem>>, vector<1x18x4xf32>
    %9 = vector.shape_cast %8 : vector<1x18x4xf32> to vector<18x4xf32>
    %10 = vector.shape_cast %7 : vector<18x4xf32> to vector<1x18x4xf32>
    tpu.vector_store %arg10[%c0_13, %c0_14, %c0_15], %10 {strides = array<i32>} : memref<18x18x4xf32, #tpu.memory_space<vmem>>, vector<1x18x4xf32>,
    %c15 = arith.constant 15 : index
    %c0_16 = arith.constant 0 : index
    %c0_17 = arith.constant 0 : index
    %11 = vector.load %arg10[%c15, %c0_16, %c0_17] : memref<18x18x4xf32, #tpu.memory_space<vmem>>, vector<1x18x4xf32>
    %12 = vector.shape_cast %11 : vector<1x18x4xf32> to vector<18x4xf32>
    %c17 = arith.constant 17 : index
    %c0_18 = arith.constant 0 : index
    %c0_19 = arith.constant 0 : index
    %13 = vector.load %arg10[%c17, %c0_18, %c0_19] : memref<18x18x4xf32, #tpu.memory_space<vmem>>, vector<1x18x4xf32>
    %14 = vector.shape_cast %13 : vector<1x18x4xf32> to vector<18x4xf32>
    %15 = vector.shape_cast %12 : vector<18x4xf32> to vector<1x18x4xf32>
    tpu.vector_store %arg10[%c17, %c0_18, %c0_19], %15 {strides = array<i32>} : memref<18x18x4xf32, #tpu.memory_space<vmem>>, vector<1x18x4xf32>,
    %c0_i32_20 = arith.constant 0 : i32
    %c16_i32_21 = arith.constant 16 : i32
    %16 = arith.addi %c0_i32_20, %c16_i32_21 : i32
    %c1_i32_22 = arith.constant 1 : i32
    scf.for %arg11 = %c0_i32_20 to %16 step %c1_i32_22  : i32 {
      %cst = arith.constant 0.000000e+00 : f32
      %17 = vector.broadcast %cst : f32 to vector<16x4xf32>
      %c0_i32_24 = arith.constant 0 : i32
      %18 = arith.addi %arg11, %c0_i32_24 : i32
      %19 = arith.index_cast %18 : i32 to index
      %c0_25 = arith.constant 0 : index
      %c0_26 = arith.constant 0 : index
      %20 = vector.load %arg10[%19, %c0_25, %c0_26] : memref<18x18x4xf32, #tpu.memory_space<vmem>>, vector<1x18x4xf32>
      %21 = vector.shape_cast %20 : vector<1x18x4xf32> to vector<18x4xf32>
      %22 = vector.extract_strided_slice %21 {offsets = [0, 0], sizes = [16, 4], strides = [1, 1]} : vector<18x4xf32> to vector<16x4xf32>
      %c0_27 = arith.constant 0 : index
      %c0_28 = arith.constant 0 : index
      %c0_29 = arith.constant 0 : index
      %23 = vector.load %arg3[%c0_27, %c0_28, %c0_29] : memref<9x4x4xf32, #tpu.memory_space<vmem>>, vector<1x4x4xf32>
      %24 = vector.shape_cast %23 : vector<1x4x4xf32> to vector<4x4xf32>
      %cst_30 = arith.constant dense<0.000000e+00> : vector<16x4xf32>
      %25 = tpu.matmul %22, %24, %cst_30 {dimension_numbers = #tpu.dot_dimension_numbers<[1], [0], [0], [1], [0, 0, 1, 1], [], []>} : vector<16x4xf32>, vector<4x4xf32>, vector<16x4xf32> -> vector<16x4xf32>
      %26 = arith.addf %17, %25 : vector<16x4xf32>
      %27 = vector.extract_strided_slice %21 {offsets = [1, 0], sizes = [16, 4], strides = [1, 1]} : vector<18x4xf32> to vector<16x4xf32>
      %c1 = arith.constant 1 : index
      %c0_31 = arith.constant 0 : index
      %c0_32 = arith.constant 0 : index
      %28 = vector.load %arg3[%c1, %c0_31, %c0_32] : memref<9x4x4xf32, #tpu.memory_space<vmem>>, vector<1x4x4xf32>
      %29 = vector.shape_cast %28 : vector<1x4x4xf32> to vector<4x4xf32>
      %cst_33 = arith.constant dense<0.000000e+00> : vector<16x4xf32>
      %30 = tpu.matmul %27, %29, %cst_33 {dimension_numbers = #tpu.dot_dimension_numbers<[1], [0], [0], [1], [0, 0, 1, 1], [], []>} : vector<16x4xf32>, vector<4x4xf32>, vector<16x4xf32> -> vector<16x4xf32>
      %31 = arith.addf %26, %30 : vector<16x4xf32>
      %32 = vector.extract_strided_slice %21 {offsets = [2, 0], sizes = [16, 4], strides = [1, 1]} : vector<18x4xf32> to vector<16x4xf32>
      %c2_34 = arith.constant 2 : index
      %c0_35 = arith.constant 0 : index
      %c0_36 = arith.constant 0 : index
      %33 = vector.load %arg3[%c2_34, %c0_35, %c0_36] : memref<9x4x4xf32, #tpu.memory_space<vmem>>, vector<1x4x4xf32>
      %34 = vector.shape_cast %33 : vector<1x4x4xf32> to vector<4x4xf32>
      %cst_37 = arith.constant dense<0.000000e+00> : vector<16x4xf32>
      %35 = tpu.matmul %32, %34, %cst_37 {dimension_numbers = #tpu.dot_dimension_numbers<[1], [0], [0], [1], [0, 0, 1, 1], [], []>} : vector<16x4xf32>, vector<4x4xf32>, vector<16x4xf32> -> vector<16x4xf32>
      %36 = arith.addf %31, %35 : vector<16x4xf32>
      %c1_i32_38 = arith.constant 1 : i32
      %37 = arith.addi %arg11, %c1_i32_38 : i32
      %38 = arith.index_cast %37 : i32 to index
      %c0_39 = arith.constant 0 : index
      %c0_40 = arith.constant 0 : index
      %39 = vector.load %arg10[%38, %c0_39, %c0_40] : memref<18x18x4xf32, #tpu.memory_space<vmem>>, vector<1x18x4xf32>
      %40 = vector.shape_cast %39 : vector<1x18x4xf32> to vector<18x4xf32>
      %41 = vector.extract_strided_slice %40 {offsets = [0, 0], sizes = [16, 4], strides = [1, 1]} : vector<18x4xf32> to vector<16x4xf32>
      %c3 = arith.constant 3 : index
      %c0_41 = arith.constant 0 : index
      %c0_42 = arith.constant 0 : index
      %42 = vector.load %arg3[%c3, %c0_41, %c0_42] : memref<9x4x4xf32, #tpu.memory_space<vmem>>, vector<1x4x4xf32>
      %43 = vector.shape_cast %42 : vector<1x4x4xf32> to vector<4x4xf32>
      %cst_43 = arith.constant dense<0.000000e+00> : vector<16x4xf32>
      %44 = tpu.matmul %41, %43, %cst_43 {dimension_numbers = #tpu.dot_dimension_numbers<[1], [0], [0], [1], [0, 0, 1, 1], [], []>} : vector<16x4xf32>, vector<4x4xf32>, vector<16x4xf32> -> vector<16x4xf32>
      %45 = arith.addf %36, %44 : vector<16x4xf32>
      %46 = vector.extract_strided_slice %40 {offsets = [1, 0], sizes = [16, 4], strides = [1, 1]} : vector<18x4xf32> to vector<16x4xf32>
      %c4 = arith.constant 4 : index
      %c0_44 = arith.constant 0 : index
      %c0_45 = arith.constant 0 : index
      %47 = vector.load %arg3[%c4, %c0_44, %c0_45] : memref<9x4x4xf32, #tpu.memory_space<vmem>>, vector<1x4x4xf32>
      %48 = vector.shape_cast %47 : vector<1x4x4xf32> to vector<4x4xf32>
      %cst_46 = arith.constant dense<0.000000e+00> : vector<16x4xf32>
      %49 = tpu.matmul %46, %48, %cst_46 {dimension_numbers = #tpu.dot_dimension_numbers<[1], [0], [0], [1], [0, 0, 1, 1], [], []>} : vector<16x4xf32>, vector<4x4xf32>, vector<16x4xf32> -> vector<16x4xf32>
      %50 = arith.addf %45, %49 : vector<16x4xf32>
      %51 = vector.extract_strided_slice %40 {offsets = [2, 0], sizes = [16, 4], strides = [1, 1]} : vector<18x4xf32> to vector<16x4xf32>
      %c5 = arith.constant 5 : index
      %c0_47 = arith.constant 0 : index
      %c0_48 = arith.constant 0 : index
      %52 = vector.load %arg3[%c5, %c0_47, %c0_48] : memref<9x4x4xf32, #tpu.memory_space<vmem>>, vector<1x4x4xf32>
      %53 = vector.shape_cast %52 : vector<1x4x4xf32> to vector<4x4xf32>
      %cst_49 = arith.constant dense<0.000000e+00> : vector<16x4xf32>
      %54 = tpu.matmul %51, %53, %cst_49 {dimension_numbers = #tpu.dot_dimension_numbers<[1], [0], [0], [1], [0, 0, 1, 1], [], []>} : vector<16x4xf32>, vector<4x4xf32>, vector<16x4xf32> -> vector<16x4xf32>
      %55 = arith.addf %50, %54 : vector<16x4xf32>
      %c2_i32 = arith.constant 2 : i32
      %56 = arith.addi %arg11, %c2_i32 : i32
      %57 = arith.index_cast %56 : i32 to index
      %c0_50 = arith.constant 0 : index
      %c0_51 = arith.constant 0 : index
      %58 = vector.load %arg10[%57, %c0_50, %c0_51] : memref<18x18x4xf32, #tpu.memory_space<vmem>>, vector<1x18x4xf32>
      %59 = vector.shape_cast %58 : vector<1x18x4xf32> to vector<18x4xf32>
      %60 = vector.extract_strided_slice %59 {offsets = [0, 0], sizes = [16, 4], strides = [1, 1]} : vector<18x4xf32> to vector<16x4xf32>
      %c6 = arith.constant 6 : index
      %c0_52 = arith.constant 0 : index
      %c0_53 = arith.constant 0 : index
      %61 = vector.load %arg3[%c6, %c0_52, %c0_53] : memref<9x4x4xf32, #tpu.memory_space<vmem>>, vector<1x4x4xf32>
      %62 = vector.shape_cast %61 : vector<1x4x4xf32> to vector<4x4xf32>
      %cst_54 = arith.constant dense<0.000000e+00> : vector<16x4xf32>
      %63 = tpu.matmul %60, %62, %cst_54 {dimension_numbers = #tpu.dot_dimension_numbers<[1], [0], [0], [1], [0, 0, 1, 1], [], []>} : vector<16x4xf32>, vector<4x4xf32>, vector<16x4xf32> -> vector<16x4xf32>
      %64 = arith.addf %55, %63 : vector<16x4xf32>
      %65 = vector.extract_strided_slice %59 {offsets = [1, 0], sizes = [16, 4], strides = [1, 1]} : vector<18x4xf32> to vector<16x4xf32>
      %c7 = arith.constant 7 : index
      %c0_55 = arith.constant 0 : index
      %c0_56 = arith.constant 0 : index
      %66 = vector.load %arg3[%c7, %c0_55, %c0_56] : memref<9x4x4xf32, #tpu.memory_space<vmem>>, vector<1x4x4xf32>
      %67 = vector.shape_cast %66 : vector<1x4x4xf32> to vector<4x4xf32>
      %cst_57 = arith.constant dense<0.000000e+00> : vector<16x4xf32>
      %68 = tpu.matmul %65, %67, %cst_57 {dimension_numbers = #tpu.dot_dimension_numbers<[1], [0], [0], [1], [0, 0, 1, 1], [], []>} : vector<16x4xf32>, vector<4x4xf32>, vector<16x4xf32> -> vector<16x4xf32>
      %69 = arith.addf %64, %68 : vector<16x4xf32>
      %70 = vector.extract_strided_slice %59 {offsets = [2, 0], sizes = [16, 4], strides = [1, 1]} : vector<18x4xf32> to vector<16x4xf32>
      %c8 = arith.constant 8 : index
      %c0_58 = arith.constant 0 : index
      %c0_59 = arith.constant 0 : index
      %71 = vector.load %arg3[%c8, %c0_58, %c0_59] : memref<9x4x4xf32, #tpu.memory_space<vmem>>, vector<1x4x4xf32>
      %72 = vector.shape_cast %71 : vector<1x4x4xf32> to vector<4x4xf32>
      %cst_60 = arith.constant dense<0.000000e+00> : vector<16x4xf32>
      %73 = tpu.matmul %70, %72, %cst_60 {dimension_numbers = #tpu.dot_dimension_numbers<[1], [0], [0], [1], [0, 0, 1, 1], [], []>} : vector<16x4xf32>, vector<4x4xf32>, vector<16x4xf32> -> vector<16x4xf32>
      %74 = arith.addf %69, %73 : vector<16x4xf32>
      %75 = vector.broadcast %3 : vector<1x4xf32> to vector<16x4xf32>
      %76 = arith.mulf %74, %75 : vector<16x4xf32>
      %77 = vector.broadcast %4 : vector<1x4xf32> to vector<16x4xf32>
      %78 = arith.addf %76, %77 : vector<16x4xf32>
      %c0_61 = arith.constant 0 : index
      %79 = arith.index_cast %arg11 : i32 to index
      %c0_62 = arith.constant 0 : index
      %c0_63 = arith.constant 0 : index
      %80 = vector.load %arg1[%c0_61, %79, %c0_62, %c0_63] : memref<1x16x16x4xf32, #tpu.memory_space<vmem>>, vector<1x1x16x4xf32>
      %81 = vector.shape_cast %80 : vector<1x1x16x4xf32> to vector<16x4xf32>
      %82 = arith.addf %78, %81 : vector<16x4xf32>
      %c0_64 = arith.constant 0 : index
      %83 = arith.index_cast %arg11 : i32 to index
      %c0_65 = arith.constant 0 : index
      %c0_66 = arith.constant 0 : index
      %84 = vector.load %arg8[%c0_64, %83, %c0_65, %c0_66] : memref<1x16x16x4xf32, #tpu.memory_space<vmem>>, vector<1x1x16x4xf32>
      %85 = vector.shape_cast %84 : vector<1x1x16x4xf32> to vector<16x4xf32>
      %86 = vector.shape_cast %82 : vector<16x4xf32> to vector<1x1x16x4xf32>
      tpu.vector_store %arg8[%c0_64, %83, %c0_65, %c0_66], %86 {strides = array<i32>} : memref<1x16x16x4xf32, #tpu.memory_space<vmem>>, vector<1x1x16x4xf32>,
    }
    %c16_i32_23 = arith.constant 16 : i32
    return
  }
  func.func @transform_0(%arg0: i32) -> (i32, i32, i32, i32) {
    %c0_i32 = arith.constant 0 : i32
    %c0_i32_0 = arith.constant 0 : i32
    %c0_i32_1 = arith.constant 0 : i32
    %c0_i32_2 = arith.constant 0 : i32
    return %arg0, %c0_i32, %c0_i32_0, %c0_i32_1 : i32, i32, i32, i32
  }
  func.func @transform_1(%arg0: i32) -> (i32, i32, i32) {
    %c0_i32 = arith.constant 0 : i32
    %c0_i32_0 = arith.constant 0 : i32
    %c0_i32_1 = arith.constant 0 : i32
    %c0_i32_2 = arith.constant 0 : i32
    return %c0_i32, %c0_i32_0, %c0_i32_1 : i32, i32, i32
  }
  func.func @transform_2(%arg0: i32) -> (i32, i32, i32) {
    %c0_i32 = arith.constant 0 : i32
    %c0_i32_0 = arith.constant 0 : i32
    %c0_i32_1 = arith.constant 0 : i32
    %c0_i32_2 = arith.constant 0 : i32
    return %c0_i32, %c0_i32_0, %c0_i32_1 : i32, i32, i32
  }
  func.func @transform_3(%arg0: i32) -> (i32, i32) {
    %c0_i32 = arith.constant 0 : i32
    %c0_i32_0 = arith.constant 0 : i32
    %c0_i32_1 = arith.constant 0 : i32
    return %c0_i32, %c0_i32_0 : i32, i32
  }
  func.func @transform_4(%arg0: i32) -> (i32, i32) {
    %c0_i32 = arith.constant 0 : i32
    %c0_i32_0 = arith.constant 0 : i32
    %c0_i32_1 = arith.constant 0 : i32
    return %c0_i32, %c0_i32_0 : i32, i32
  }
  func.func @transform_5(%arg0: i32) -> (i32, i32) {
    %c0_i32 = arith.constant 0 : i32
    %c0_i32_0 = arith.constant 0 : i32
    %c0_i32_1 = arith.constant 0 : i32
    return %c0_i32, %c0_i32_0 : i32, i32
  }
  func.func @transform_6(%arg0: i32) -> (i32, i32) {
    %c0_i32 = arith.constant 0 : i32
    %c0_i32_0 = arith.constant 0 : i32
    %c0_i32_1 = arith.constant 0 : i32
    return %c0_i32, %c0_i32_0 : i32, i32
  }
  func.func @transform_7(%arg0: i32) -> (i32, i32, i32, i32) {
    %c0_i32 = arith.constant 0 : i32
    %c0_i32_0 = arith.constant 0 : i32
    %c0_i32_1 = arith.constant 0 : i32
    %c0_i32_2 = arith.constant 0 : i32
    return %arg0, %c0_i32, %c0_i32_0, %c0_i32_1 : i32, i32, i32, i32
  }
}

</mosaic_0001>

<llo_original>
// kernel: tpu_custom_call.1
$region0: #{tpu_custom_call.1}
  #allocation0 [shape = 'u32[]', space=smem, size = 0x4, offset = 0x4, fixed_abs, tag = 'smem constant byte address 0x4 - core index']
  #allocation1 [shape = 'u32[72,128]{1,0:T(1,128)}', space=vmem, size = 0x9000, scoped, tag = 'internal scratch']
  #allocation2 [shape = 'f32[18,18,4]{2,1,0:T(8,128)}', space=vmem, size = 0x36000, scoped, tag = 'scratch operand']
  #allocation3 [shape = 'f32[18,18,4]{2,1,0:T(8,128)}', space=vmem, size = 0x36000, scoped, tag = 'scratch operand']
  %s0 = inlined_call_operand.vmem [shape: f32[2,16,16,4], index: 0, kind: input, shape index: {}]
  %s1 = inlined_call_operand.vmem [shape: f32[9,4,4], index: 1, kind: input, shape index: {}]
  %s2 = inlined_call_operand.vmem [shape: f32[9,4,4], index: 2, kind: input, shape index: {}]
  %s3 = inlined_call_operand.vmem [shape: f32[1,4], index: 3, kind: input, shape index: {}]
  %s4 = inlined_call_operand.vmem [shape: f32[1,4], index: 4, kind: input, shape index: {}]
  %s5 = inlined_call_operand.vmem [shape: f32[1,4], index: 5, kind: input, shape index: {}]
  %s6 = inlined_call_operand.vmem [shape: f32[1,4], index: 6, kind: input, shape index: {}]
  %s7 = inlined_call_operand.vmem [shape: f32[2,16,16,4], index: 7, kind: output, shape index: {}]
  %s8 = sld [smem:[#allocation0]]
  $region82: #{tpu_custom_call.1} parent=0
    _
  %s10 = ssub.s32 1, %s8
  %s11 = scalar_select 0, %s10, %s8
  loop: start=0, step=1, limit=4
  $region2: #{tpu_custom_call.1} parent=0 // loop_pre_header
    _
  $region3: #{tpu_custom_call.1} parent=0 // loop_header
    %s13 = sphi 0, %s17
    %p14 = scmp.ge.s32.totalorder %s13, 4
    %s23 = sphi 0, %s25
    %s26 = sphi 0, %s23
    %s27 = sphi 0, %s26
    %s43 = sphi 0, %s27
    %s47 = sphi 0, %s47
    %s49 = sphi 0, %s47
    %s50 = sphi 0, %s49
    %s64 = sphi 0, %s50
    %s68 = sphi 0, %s68
    %s70 = sphi 0, %s68
    %s71 = sphi 0, %s70
    %s85 = sphi 0, %s71
    %s89 = sphi 0, %s89
    %s91 = sphi 0, %s89
    %s92 = sphi 0, %s91
    %s106 = sphi 0, %s92
    %s110 = sphi 0, %s110
    %s112 = sphi 0, %s110
    %s113 = sphi 0, %s112
    %s127 = sphi 0, %s113
    %s131 = sphi 0, %s131
    %s133 = sphi 0, %s131
    %s134 = sphi 0, %s133
    %s148 = sphi 0, %s134
    %s152 = sphi 0, %s152
    %s154 = sphi 0, %s152
    %s155 = sphi 0, %s154
    %s169 = sphi 0, %s155
    %s175 = sphi 0, %s177
    %s178 = sphi 0, %s175
    %s179 = sphi 0, %s178
    %s195 = sphi 0, %s179
  $region4: #{tpu_custom_call.1} parent=0 // loop_header_branch
    %16 = sbr.rel (%p14) target = $region8
  $region5: #{tpu_custom_call.1} parent=0 // loop_body
    %s18 = ssub.s32 %s13, 1
    %s19 = ssub.s32 %s13, 2
    %s20 = sadd.s32 %s13, 1
    %s21 = ssub.s32 %s13, %s20
    %p22 = scmp.eq.s32.totalorder %s21, 0
    %s24 = sadd.s32 %s23, 1
    %s25 = scalar_select %p22, %s23, %s24
    %p28 = pneg %p22
    %p29 = scmp.eq.s32.totalorder %s13, 1
    %p30 = por %p28, %p29
    %p31 = scmp.ne.s32.totalorder %s23, %s26
    %p32 = scmp.eq.s32.totalorder %s13, 0
    %p33 = por %p31, %p32
    %p34 = scmp.ne.s32.totalorder %s23, %s26
    %p35 = scmp.eq.s32.totalorder %s18, 1
    %p36 = por %p34, %p35
    %p37 = scmp.ne.s32.totalorder %s26, %s27
    %p38 = scmp.eq.s32.totalorder %s18, 0
    %p39 = por %p37, %p38
    %p40 = scmp.ne.s32.totalorder %s26, %s27
    %p41 = scmp.eq.s32.totalorder %s19, 1
    %p42 = por %p40, %p41
    %p44 = scmp.ne.s32.totalorder %s27, %s43
    %p45 = scmp.eq.s32.totalorder %s19, 0
    %p46 = por %p44, %p45
    %s48 = sadd.s32 %s47, 1
    %p51 = scmp.eq.s32.totalorder %s13, 1
    %p52 = scmp.ne.s32.totalorder %s47, %s49
    %p53 = scmp.eq.s32.totalorder %s13, 0
    %p54 = por %p52, %p53
    %p55 = scmp.ne.s32.totalorder %s47, %s49
    %p56 = scmp.eq.s32.totalorder %s18, 1
    %p57 = por %p55, %p56
    %p58 = scmp.ne.s32.totalorder %s49, %s50
    %p59 = scmp.eq.s32.totalorder %s18, 0
    %p60 = por %p58, %p59
    %p61 = scmp.ne.s32.totalorder %s49, %s50
    %p62 = scmp.eq.s32.totalorder %s19, 1
    %p63 = por %p61, %p62
    %p65 = scmp.ne.s32.totalorder %s50, %s64
    %p66 = scmp.eq.s32.totalorder %s19, 0
    %p67 = por %p65, %p66
    %s69 = sadd.s32 %s68, 1
    %p72 = scmp.eq.s32.totalorder %s13, 1
    %p73 = scmp.ne.s32.totalorder %s68, %s70
    %p74 = scmp.eq.s32.totalorder %s13, 0
    %p75 = por %p73, %p74
    %p76 = scmp.ne.s32.totalorder %s68, %s70
    %p77 = scmp.eq.s32.totalorder %s18, 1
    %p78 = por %p76, %p77
    %p79 = scmp.ne.s32.totalorder %s70, %s71
    %p80 = scmp.eq.s32.totalorder %s18, 0
    %p81 = por %p79, %p80
    %p82 = scmp.ne.s32.totalorder %s70, %s71
    %p83 = scmp.eq.s32.totalorder %s19, 1
    %p84 = por %p82, %p83
    %p86 = scmp.ne.s32.totalorder %s71, %s85
    %p87 = scmp.eq.s32.totalorder %s19, 0
    %p88 = por %p86, %p87
    %s90 = sadd.s32 %s89, 1
    %p93 = scmp.eq.s32.totalorder %s13, 1
    %p94 = scmp.ne.s32.totalorder %s89, %s91
    %p95 = scmp.eq.s32.totalorder %s13, 0
    %p96 = por %p94, %p95
    %p97 = scmp.ne.s32.totalorder %s89, %s91
    %p98 = scmp.eq.s32.totalorder %s18, 1
    %p99 = por %p97, %p98
    %p100 = scmp.ne.s32.totalorder %s91, %s92
    %p101 = scmp.eq.s32.totalorder %s18, 0
    %p102 = por %p100, %p101
    %p103 = scmp.ne.s32.totalorder %s91, %s92
    %p104 = scmp.eq.s32.totalorder %s19, 1
    %p105 = por %p103, %p104
    %p107 = scmp.ne.s32.totalorder %s92, %s106
    %p108 = scmp.eq.s32.totalorder %s19, 0
    %p109 = por %p107, %p108
    %s111 = sadd.s32 %s110, 1
    %p114 = scmp.eq.s32.totalorder %s13, 1
    %p115 = scmp.ne.s32.totalorder %s110, %s112
    %p116 = scmp.eq.s32.totalorder %s13, 0
    %p117 = por %p115, %p116
    %p118 = scmp.ne.s32.totalorder %s110, %s112
    %p119 = scmp.eq.s32.totalorder %s18, 1
    %p120 = por %p118, %p119
    %p121 = scmp.ne.s32.totalorder %s112, %s113
    %p122 = scmp.eq.s32.totalorder %s18, 0
    %p123 = por %p121, %p122
    %p124 = scmp.ne.s32.totalorder %s112, %s113
    %p125 = scmp.eq.s32.totalorder %s19, 1
    %p126 = por %p124, %p125
    %p128 = scmp.ne.s32.totalorder %s113, %s127
    %p129 = scmp.eq.s32.totalorder %s19, 0
    %p130 = por %p128, %p129
    %s132 = sadd.s32 %s131, 1
    %p135 = scmp.eq.s32.totalorder %s13, 1
    %p136 = scmp.ne.s32.totalorder %s131, %s133
    %p137 = scmp.eq.s32.totalorder %s13, 0
    %p138 = por %p136, %p137
    %p139 = scmp.ne.s32.totalorder %s131, %s133
    %p140 = scmp.eq.s32.totalorder %s18, 1
    %p141 = por %p139, %p140
    %p142 = scmp.ne.s32.totalorder %s133, %s134
    %p143 = scmp.eq.s32.totalorder %s18, 0
    %p144 = por %p142, %p143
    %p145 = scmp.ne.s32.totalorder %s133, %s134
    %p146 = scmp.eq.s32.totalorder %s19, 1
    %p147 = por %p145, %p146
    %p149 = scmp.ne.s32.totalorder %s134, %s148
    %p150 = scmp.eq.s32.totalorder %s19, 0
    %p151 = por %p149, %p150
    %s153 = sadd.s32 %s152, 1
    %p156 = scmp.eq.s32.totalorder %s13, 1
    %p157 = scmp.ne.s32.totalorder %s152, %s154
    %p158 = scmp.eq.s32.totalorder %s13, 0
    %p159 = por %p157, %p158
    %p160 = scmp.ne.s32.totalorder %s152, %s154
    %p161 = scmp.eq.s32.totalorder %s18, 1
    %p162 = por %p160, %p161
    %p163 = scmp.ne.s32.totalorder %s154, %s155
    %p164 = scmp.eq.s32.totalorder %s18, 0
    %p165 = por %p163, %p164
    %p166 = scmp.ne.s32.totalorder %s154, %s155
    %p167 = scmp.eq.s32.totalorder %s19, 1
    %p168 = por %p166, %p167
    %p170 = scmp.ne.s32.totalorder %s155, %s169
    %p171 = scmp.eq.s32.totalorder %s19, 0
    %p172 = por %p170, %p171
    %s173 = ssub.s32 %s13, %s20
    %p174 = scmp.eq.s32.totalorder %s173, 0
    %s176 = sadd.s32 %s175, 1
    %s177 = scalar_select %p174, %s175, %s176
    %p180 = pneg %p174
    %p181 = scmp.eq.s32.totalorder %s13, 1
    %p182 = por %p180, %p181
    %p183 = scmp.ne.s32.totalorder %s175, %s178
    %p184 = scmp.eq.s32.totalorder %s13, 0
    %p185 = por %p183, %p184
    %p186 = scmp.ne.s32.totalorder %s175, %s178
    %p187 = scmp.eq.s32.totalorder %s18, 1
    %p188 = por %p186, %p187
    %p189 = scmp.ne.s32.totalorder %s178, %s179
    %p190 = scmp.eq.s32.totalorder %s18, 0
    %p191 = por %p189, %p190
    %p192 = scmp.ne.s32.totalorder %s178, %s179
    %p193 = scmp.eq.s32.totalorder %s19, 1
    %p194 = por %p192, %p193
    %p196 = scmp.ne.s32.totalorder %s179, %s195
    %p197 = scmp.eq.s32.totalorder %s19, 0
    %p198 = por %p196, %p197
    %p199 = scmp.le.s32.totalorder 1, %s13
    %p200 = scmp.lt.s32.totalorder %s13, 3
    %p201 = pnand %p199, %p200
    %p202 = pneg %p201
    // Predicated region
    $region9: #{tpu_custom_call.1} parent=5 // pred_check
      _
    $region10: #{tpu_custom_call.1} parent=5 // pred_check_branch
      %204 = sbr.rel (%p201) target = $region12
    $region11: #{tpu_custom_call.1} parent=5 // pred_region
      %s205 = ssub.s32 %s13, 1
      // Predicated region
      $region13: #{tpu_custom_call.1} parent=11 // pred_check
        %p206 = pneg %p60
      $region14: #{tpu_custom_call.1} parent=11 // pred_check_branch
        %208 = sbr.rel (%p206) target = $region16
      $region15: #{tpu_custom_call.1} parent=11 // pred_region
        _
      $region16: #{tpu_custom_call.1} parent=11 // pred_fallthru
        _
      // Predicated region
      $region17: #{tpu_custom_call.1} parent=11 // pred_check
        %p209 = pneg %p81
      $region18: #{tpu_custom_call.1} parent=11 // pred_check_branch
        %211 = sbr.rel (%p209) target = $region20
      $region19: #{tpu_custom_call.1} parent=11 // pred_region
        _
      $region20: #{tpu_custom_call.1} parent=11 // pred_fallthru
        _
      // Predicated region
      $region21: #{tpu_custom_call.1} parent=11 // pred_check
        %p212 = pneg %p102
      $region22: #{tpu_custom_call.1} parent=11 // pred_check_branch
        %214 = sbr.rel (%p212) target = $region24
      $region23: #{tpu_custom_call.1} parent=11 // pred_region
        _
      $region24: #{tpu_custom_call.1} parent=11 // pred_fallthru
        _
      // Predicated region
      $region25: #{tpu_custom_call.1} parent=11 // pred_check
        %p215 = pneg %p123
      $region26: #{tpu_custom_call.1} parent=11 // pred_check_branch
        %217 = sbr.rel (%p215) target = $region28
      $region27: #{tpu_custom_call.1} parent=11 // pred_region
        _
      $region28: #{tpu_custom_call.1} parent=11 // pred_fallthru
        _
      // Predicated region
      $region29: #{tpu_custom_call.1} parent=11 // pred_check
        %p218 = pneg %p144
      $region30: #{tpu_custom_call.1} parent=11 // pred_check_branch
        %220 = sbr.rel (%p218) target = $region32
      $region31: #{tpu_custom_call.1} parent=11 // pred_region
        _
      $region32: #{tpu_custom_call.1} parent=11 // pred_fallthru
        _
      // Predicated region
      $region33: #{tpu_custom_call.1} parent=11 // pred_check
        %p221 = pneg %p165
      $region34: #{tpu_custom_call.1} parent=11 // pred_check_branch
        %223 = sbr.rel (%p221) target = $region36
      $region35: #{tpu_custom_call.1} parent=11 // pred_region
        _
      $region36: #{tpu_custom_call.1} parent=11 // pred_fallthru
        _
    $region12: #{tpu_custom_call.1} parent=5 // pred_fallthru
      _
    %p224 = scmp.lt.s32.totalorder %s13, 2
    // Predicated region
    $region37: #{tpu_custom_call.1} parent=5 // pred_check
      %p225 = pneg %p224
    $region38: #{tpu_custom_call.1} parent=5 // pred_check_branch
      %227 = sbr.rel (%p225) target = $region40
    $region39: #{tpu_custom_call.1} parent=5 // pred_region
      // Predicated region
      $region41: #{tpu_custom_call.1} parent=39 // pred_check
        %p228 = pneg %p33
      $region42: #{tpu_custom_call.1} parent=39 // pred_check_branch
        %230 = sbr.rel (%p228) target = $region44
      $region43: #{tpu_custom_call.1} parent=39 // pred_region
        %p231 = scmp.lt.s32.totalorder %s13, 1
        %s232 = scalar_select %p231, %s13, 1
        %s233 = smul.addr %s232, 32
        %s234 = smul.addr %s233, 8
        %s235 = scalar_lea.vmem %s0, %s234
      $region44: #{tpu_custom_call.1} parent=39 // pred_fallthru
        _
    $region40: #{tpu_custom_call.1} parent=5 // pred_fallthru
      _
    %p236 = scmp.le.s32.totalorder 1, %s13
    %p237 = scmp.lt.s32.totalorder %s13, 3
    %p238 = pnand %p236, %p237
    %p239 = pneg %p238
    // Predicated region
    $region45: #{tpu_custom_call.1} parent=5 // pred_check
      _
    $region46: #{tpu_custom_call.1} parent=5 // pred_check_branch
      %241 = sbr.rel (%p238) target = $region48
    $region47: #{tpu_custom_call.1} parent=5 // pred_region
      %s242 = ssub.s32 %s13, 1
      %p243 = scmp.lt.s32.totalorder %s18, 1
      %s244 = scalar_select %p243, %s18, 1
      %s245 = smul.addr %s244, 32
      %s246 = smul.addr %s245, 8
      %s247 = scalar_lea.vmem %s0, %s246
      %p248 = pneg %p39
      %p249 = pneg %p36
      %p250 = pneg %p60
      %p251 = pneg %p57
      %p252 = pneg %p81
      %p253 = pneg %p78
      %p254 = pneg %p102
      %p255 = pneg %p99
      %p256 = pneg %p123
      %p257 = pneg %p120
      %p258 = pneg %p144
      %p259 = pneg %p141
      %p260 = pneg %p165
      %p261 = pneg %p162
      %p262 = pneg %p191
      %p263 = pneg %p188
      %p264 = scmp.lt.s32.totalorder %s18, 1
      %s265 = scalar_select %p264, %s18, 1
      %s266 = smul.addr %s265, 32
      %s267 = smul.addr %s266, 8
      %s268 = scalar_lea.vmem %s7, %s267
      %p269 = scmp.lt.s32.totalorder %s18, 1
      %s270 = scalar_select %p269, %s18, 1
      %s271 = smul.addr %s270, 32
      %s272 = smul.addr %s271, 8
      %s273 = scalar_lea.vmem %s0, %s272
      %p274 = scmp.lt.s32.totalorder %s18, 1
      %s275 = scalar_select %p274, %s18, 1
      %s276 = smul.addr %s275, 32
      %s277 = smul.addr %s276, 8
      %s278 = scalar_lea.vmem %s7, %s277
      loop: start=0, step=1, limit=18
      $region49: #{tpu_custom_call.1} parent=47 // loop_pre_header
        _
      $region50: #{tpu_custom_call.1} parent=47 // loop_header
        %s280 = sphi 0, %s284
        %p281 = scmp.ge.s32.totalorder %s280, 18
      $region51: #{tpu_custom_call.1} parent=47 // loop_header_branch
        %283 = sbr.rel (%p281) target = $region55
      $region52: #{tpu_custom_call.1} parent=47 // loop_body
        %s285 = ssub.s32 %s280, 1
        %s286 = sshra.s32 %s285, 31
        %s287 = sadd.s32 %s285, %s286
        %s288 = sxor.u32 %s287, %s286
        %p289 = scmp.gt.s32.totalorder %s288, 15
        %s290 = ssub.s32 30, %s288
        %s291 = scalar_select %p289, %s290, %s288
        %s292 = smul.u32 %s291, 16
        %s293 = scalar_lea.vmem %s273, %s292
        %v294 = vld [vmem:[%s293] sm:$0xff]
        %v295 = vld [vmem:[%s293 + $0x8] sm:$0xff]
        %v297 = vrot.slane %v294, 1
        %vm300 = vcmask 1040384
        %v301 = vrot.slane %v294, 7
        %v302 = vrot.slane %v295, 7
        %v303 = vsel %vm300, %v301, %v302
        %v307 = vrot.slane %v295, 5
        %v309 = vsel %vm300, %v297, %v301
        %v310 = vsel %vm300, %v302, %v307
        %s311 = smul.u32 %s280, 24
        %s312 = scalar_lea.vmem [#allocation2], %s311
        %vm313 = vcmask 31744
        %314 = vst.msk [vmem:[%s312] sm:$0xff] %vm313, %v309
        %315 = vst.msk [vmem:[%s312 + $0x8] sm:$0xff] %vm313, %v303
        %vm316 = vcmask 25600
        %317 = vst.msk [vmem:[%s312 + $0x10] sm:$0x3] %vm316, %v310
      $region53: #{tpu_custom_call.1} parent=47 // loop_footer
        %s284 = sadd.s32 1, %s280
      $region54: #{tpu_custom_call.1} parent=47 // loop_footer_branch
        %279 = sbr.rel target = $region50
      $region55: #{tpu_custom_call.1} parent=47 // loop_exit
        _
      %v318 = vld [vmem:[%s3] sm:$0x1]
      %v319 = vld [vmem:[%s4] sm:$0x1]
      %v320 = vld [vmem:[%s5] sm:$0x1]
      %v321 = vld [vmem:[%s6] sm:$0x1]
      loop: start=0, step=1, limit=16
      $region56: #{tpu_custom_call.1} parent=47 // loop_pre_header
        _
      $region57: #{tpu_custom_call.1} parent=47 // loop_header
        %s323 = sphi 0, %s327
        %p324 = scmp.ge.s32.totalorder %s323, 16
      $region58: #{tpu_custom_call.1} parent=47 // loop_header_branch
        %326 = sbr.rel (%p324) target = $region62
      $region59: #{tpu_custom_call.1} parent=47 // loop_body
        %s328 = smul.u32 %s323, 24
        %s329 = scalar_lea.vmem [#allocation2], %s328
        %v330 = vld [vmem:[%s329] sm:$0xff]
        %v331 = vld [vmem:[%s329 + $0x8] sm:$0xff]
        %v332 = vld [vmem:[%s329 + $0x10] sm:$0x3]
        %v333 = vld [vmem:[%s1] sm:$0xf]
        %s334 = scalar_lea.vmem %s1, 4
        %v335 = vld [vmem:[%s334] sm:$0xf]
        %vm339 = vcmask 1046528
        %v340 = vrot.slane %v330, 1
        %v341 = vrot.slane %v331, 1
        %v342 = vsel %vm339, %v340, %v341
        %v343 = vrot.slane %v332, 1
        %v344 = vsel %vm339, %v341, %v343
        %vm345 = vcmask 31744
        %v346 = vsel %vm345, %v342, 0
        %v348 = vsel %vm345, %v344, 0
        %vm350 = vcmask 1043456
        %v352 = vsel %vm350, %v335, 0
        %354 = vmatpush.msra.mxu0 0.0
        %355 = vmatpush.msra.mxu0 0.0
        %356 = vmatpush.msra.mxu0 0.0
        %357 = vmatpush.msra.mxu0 0.0
        %358 = vmatpush.msra.mxu0 0.0
        %359 = vmatpush.msra.mxu0 0.0
        %360 = vmatpush.msra.mxu0 0.0
        %361 = vmatpush.msra.mxu0 0.0
        %362 = vmatpush.msra.mxu0 0.0
        %363 = vmatpush.msra.mxu0 0.0
        %364 = vmatpush.msra.mxu0 0.0
        %365 = vmatpush.msra.mxu0 0.0
        %366 = vmatpush.msra.mxu0 0.0
        %367 = vmatpush.msra.mxu0 0.0
        %368 = vmatpush.msra.mxu0 0.0
        %369 = vmatpush.msra.mxu0 %v352
        %370 = vmatmul.f32.gmra.mxu0 %v346
        %v371 = vpop.f32.mrf.mxu0
        %v372 = vadd.f32 0.0, %v371
        %373 = vmatmul.f32.gmra.mxu0 %v348
        %v374 = vpop.f32.mrf.mxu0
        %v375 = vadd.f32 0.0, %v374
        %376 = vdwg.mxu0
        %v377 = vsel %vm345, %v330, 0
        %v379 = vsel %vm345, %v331, 0
        %v382 = vsel %vm350, %v333, 0
        %384 = vmatpush.msra.mxu0 0.0
        %385 = vmatpush.msra.mxu0 0.0
        %386 = vmatpush.msra.mxu0 0.0
        %387 = vmatpush.msra.mxu0 0.0
        %388 = vmatpush.msra.mxu0 0.0
        %389 = vmatpush.msra.mxu0 0.0
        %390 = vmatpush.msra.mxu0 0.0
        %391 = vmatpush.msra.mxu0 0.0
        %392 = vmatpush.msra.mxu0 0.0
        %393 = vmatpush.msra.mxu0 0.0
        %394 = vmatpush.msra.mxu0 0.0
        %395 = vmatpush.msra.mxu0 0.0
        %396 = vmatpush.msra.mxu0 0.0
        %397 = vmatpush.msra.mxu0 0.0
        %398 = vmatpush.msra.mxu0 0.0
        %399 = vmatpush.msra.mxu0 %v382
        %400 = vmatmul.f32.gmra.mxu0 %v377
        %v401 = vpop.f32.mrf.mxu0
        %v402 = vadd.f32 %v372, %v401
        %403 = vmatmul.f32.gmra.mxu0 %v379
        %v404 = vpop.f32.mrf.mxu0
        %v405 = vadd.f32 %v375, %v404
        %406 = vdwg.mxu0
        %s407 = scalar_lea.vmem %s1, 8
        %v408 = vld [vmem:[%s407] sm:$0xf]
        %vm409 = vcmask 1045504
        %v410 = vrot.slane %v330, 2
        %v411 = vrot.slane %v331, 2
        %v412 = vsel %vm409, %v410, %v411
        %v413 = vrot.slane %v332, 2
        %v414 = vsel %vm409, %v411, %v413
        %v415 = vsel %vm345, %v412, 0
        %v417 = vsel %vm345, %v414, 0
        %v420 = vsel %vm350, %v408, 0
        %422 = vmatpush.msra.mxu0 0.0
        %423 = vmatpush.msra.mxu0 0.0
        %424 = vmatpush.msra.mxu0 0.0
        %425 = vmatpush.msra.mxu0 0.0
        %426 = vmatpush.msra.mxu0 0.0
        %427 = vmatpush.msra.mxu0 0.0
        %428 = vmatpush.msra.mxu0 0.0
        %429 = vmatpush.msra.mxu0 0.0
        %430 = vmatpush.msra.mxu0 0.0
        %431 = vmatpush.msra.mxu0 0.0
        %432 = vmatpush.msra.mxu0 0.0
        %433 = vmatpush.msra.mxu0 0.0
        %434 = vmatpush.msra.mxu0 0.0
        %435 = vmatpush.msra.mxu0 0.0
        %436 = vmatpush.msra.mxu0 0.0
        %437 = vmatpush.msra.mxu0 %v420
        %438 = vmatmul.f32.gmra.mxu0 %v415
        %v439 = vpop.f32.mrf.mxu0
        %v440 = vadd.f32 0.0, %v439
        %441 = vmatmul.f32.gmra.mxu0 %v417
        %v442 = vpop.f32.mrf.mxu0
        %v443 = vadd.f32 0.0, %v442
        %444 = vdwg.mxu0
        %v445 = vadd.f32 %v402, %v440
        %v446 = vadd.f32 %v405, %v443
        %s447 = sadd.s32 %s323, 1
        %s448 = smul.u32 %s447, 24
        %s449 = scalar_lea.vmem [#allocation2], %s448
        %v450 = vld [vmem:[%s449] sm:$0xff]
        %v451 = vld [vmem:[%s449 + $0x8] sm:$0xff]
        %v452 = vld [vmem:[%s449 + $0x10] sm:$0x3]
        %s453 = scalar_lea.vmem %s1, 12
        %v454 = vld [vmem:[%s453] sm:$0xf]
        %v456 = vsel %vm345, %v450, 0
        %v459 = vsel %vm345, %v451, 0
        %v462 = vsel %vm350, %v454, 0
        %464 = vmatpush.msra.mxu0 0.0
        %465 = vmatpush.msra.mxu0 0.0
        %466 = vmatpush.msra.mxu0 0.0
        %467 = vmatpush.msra.mxu0 0.0
        %468 = vmatpush.msra.mxu0 0.0
        %469 = vmatpush.msra.mxu0 0.0
        %470 = vmatpush.msra.mxu0 0.0
        %471 = vmatpush.msra.mxu0 0.0
        %472 = vmatpush.msra.mxu0 0.0
        %473 = vmatpush.msra.mxu0 0.0
        %474 = vmatpush.msra.mxu0 0.0
        %475 = vmatpush.msra.mxu0 0.0
        %476 = vmatpush.msra.mxu0 0.0
        %477 = vmatpush.msra.mxu0 0.0
        %478 = vmatpush.msra.mxu0 0.0
        %479 = vmatpush.msra.mxu0 %v462
        %480 = vmatmul.f32.gmra.mxu0 %v456
        %v481 = vpop.f32.mrf.mxu0
        %v482 = vadd.f32 0.0, %v481
        %483 = vmatmul.f32.gmra.mxu0 %v459
        %v484 = vpop.f32.mrf.mxu0
        %v485 = vadd.f32 0.0, %v484
        %486 = vdwg.mxu0
        %v487 = vadd.f32 %v445, %v482
        %v488 = vadd.f32 %v446, %v485
        %s489 = scalar_lea.vmem %s1, 16
        %v490 = vld [vmem:[%s489] sm:$0xf]
        %v492 = vrot.slane %v450, 1
        %v493 = vrot.slane %v451, 1
        %v494 = vsel %vm339, %v492, %v493
        %v495 = vrot.slane %v452, 1
        %v496 = vsel %vm339, %v493, %v495
        %v497 = vsel %vm345, %v494, 0
        %v499 = vsel %vm345, %v496, 0
        %v502 = vsel %vm350, %v490, 0
        %504 = vmatpush.msra.mxu0 0.0
        %505 = vmatpush.msra.mxu0 0.0
        %506 = vmatpush.msra.mxu0 0.0
        %507 = vmatpush.msra.mxu0 0.0
        %508 = vmatpush.msra.mxu0 0.0
        %509 = vmatpush.msra.mxu0 0.0
        %510 = vmatpush.msra.mxu0 0.0
        %511 = vmatpush.msra.mxu0 0.0
        %512 = vmatpush.msra.mxu0 0.0
        %513 = vmatpush.msra.mxu0 0.0
        %514 = vmatpush.msra.mxu0 0.0
        %515 = vmatpush.msra.mxu0 0.0
        %516 = vmatpush.msra.mxu0 0.0
        %517 = vmatpush.msra.mxu0 0.0
        %518 = vmatpush.msra.mxu0 0.0
        %519 = vmatpush.msra.mxu0 %v502
        %520 = vmatmul.f32.gmra.mxu0 %v497
        %v521 = vpop.f32.mrf.mxu0
        %v522 = vadd.f32 0.0, %v521
        %523 = vmatmul.f32.gmra.mxu0 %v499
        %v524 = vpop.f32.mrf.mxu0
        %v525 = vadd.f32 0.0, %v524
        %526 = vdwg.mxu0
        %v527 = vadd.f32 %v487, %v522
        %v528 = vadd.f32 %v488, %v525
        %s529 = scalar_lea.vmem %s1, 20
        %v530 = vld [vmem:[%s529] sm:$0xf]
        %v531 = vrot.slane %v450, 2
        %v532 = vrot.slane %v451, 2
        %v533 = vsel %vm409, %v531, %v532
        %v534 = vrot.slane %v452, 2
        %v535 = vsel %vm409, %v532, %v534
        %v536 = vsel %vm345, %v533, 0
        %v538 = vsel %vm345, %v535, 0
        %v541 = vsel %vm350, %v530, 0
        %543 = vmatpush.msra.mxu0 0.0
        %544 = vmatpush.msra.mxu0 0.0
        %545 = vmatpush.msra.mxu0 0.0
        %546 = vmatpush.msra.mxu0 0.0
        %547 = vmatpush.msra.mxu0 0.0
        %548 = vmatpush.msra.mxu0 0.0
        %549 = vmatpush.msra.mxu0 0.0
        %550 = vmatpush.msra.mxu0 0.0
        %551 = vmatpush.msra.mxu0 0.0
        %552 = vmatpush.msra.mxu0 0.0
        %553 = vmatpush.msra.mxu0 0.0
        %554 = vmatpush.msra.mxu0 0.0
        %555 = vmatpush.msra.mxu0 0.0
        %556 = vmatpush.msra.mxu0 0.0
        %557 = vmatpush.msra.mxu0 0.0
        %558 = vmatpush.msra.mxu0 %v541
        %559 = vmatmul.f32.gmra.mxu0 %v536
        %v560 = vpop.f32.mrf.mxu0
        %v561 = vadd.f32 0.0, %v560
        %562 = vmatmul.f32.gmra.mxu0 %v538
        %v563 = vpop.f32.mrf.mxu0
        %v564 = vadd.f32 0.0, %v563
        %565 = vdwg.mxu0
        %v566 = vadd.f32 %v527, %v561
        %v567 = vadd.f32 %v528, %v564
        %s568 = sadd.s32 %s323, 2
        %s569 = smul.u32 %s568, 24
        %s570 = scalar_lea.vmem [#allocation2], %s569
        %v571 = vld [vmem:[%s570] sm:$0xff]
        %v572 = vld [vmem:[%s570 + $0x8] sm:$0xff]
        %v573 = vld [vmem:[%s570 + $0x10] sm:$0x3]
        %s574 = scalar_lea.vmem %s1, 24
        %v575 = vld [vmem:[%s574] sm:$0xf]
        %v577 = vsel %vm345, %v571, 0
        %v580 = vsel %vm345, %v572, 0
        %v583 = vsel %vm350, %v575, 0
        %585 = vmatpush.msra.mxu0 0.0
        %586 = vmatpush.msra.mxu0 0.0
        %587 = vmatpush.msra.mxu0 0.0
        %588 = vmatpush.msra.mxu0 0.0
        %589 = vmatpush.msra.mxu0 0.0
        %590 = vmatpush.msra.mxu0 0.0
        %591 = vmatpush.msra.mxu0 0.0
        %592 = vmatpush.msra.mxu0 0.0
        %593 = vmatpush.msra.mxu0 0.0
        %594 = vmatpush.msra.mxu0 0.0
        %595 = vmatpush.msra.mxu0 0.0
        %596 = vmatpush.msra.mxu0 0.0
        %597 = vmatpush.msra.mxu0 0.0
        %598 = vmatpush.msra.mxu0 0.0
        %599 = vmatpush.msra.mxu0 0.0
        %600 = vmatpush.msra.mxu0 %v583
        %601 = vmatmul.f32.gmra.mxu0 %v577
        %v602 = vpop.f32.mrf.mxu0
        %v603 = vadd.f32 0.0, %v602
        %604 = vmatmul.f32.gmra.mxu0 %v580
        %v605 = vpop.f32.mrf.mxu0
        %v606 = vadd.f32 0.0, %v605
        %607 = vdwg.mxu0
        %v608 = vadd.f32 %v566, %v603
        %v609 = vadd.f32 %v567, %v606
        %s610 = scalar_lea.vmem %s1, 28
        %v611 = vld [vmem:[%s610] sm:$0xf]
        %v613 = vrot.slane %v571, 1
        %v614 = vrot.slane %v572, 1
        %v615 = vsel %vm339, %v613, %v614
        %v616 = vrot.slane %v573, 1
        %v617 = vsel %vm339, %v614, %v616
        %v618 = vsel %vm345, %v615, 0
        %v620 = vsel %vm345, %v617, 0
        %v623 = vsel %vm350, %v611, 0
        %625 = vmatpush.msra.mxu0 0.0
        %626 = vmatpush.msra.mxu0 0.0
        %627 = vmatpush.msra.mxu0 0.0
        %628 = vmatpush.msra.mxu0 0.0
        %629 = vmatpush.msra.mxu0 0.0
        %630 = vmatpush.msra.mxu0 0.0
        %631 = vmatpush.msra.mxu0 0.0
        %632 = vmatpush.msra.mxu0 0.0
        %633 = vmatpush.msra.mxu0 0.0
        %634 = vmatpush.msra.mxu0 0.0
        %635 = vmatpush.msra.mxu0 0.0
        %636 = vmatpush.msra.mxu0 0.0
        %637 = vmatpush.msra.mxu0 0.0
        %638 = vmatpush.msra.mxu0 0.0
        %639 = vmatpush.msra.mxu0 0.0
        %640 = vmatpush.msra.mxu0 %v623
        %641 = vmatmul.f32.gmra.mxu0 %v618
        %v642 = vpop.f32.mrf.mxu0
        %v643 = vadd.f32 0.0, %v642
        %644 = vmatmul.f32.gmra.mxu0 %v620
        %v645 = vpop.f32.mrf.mxu0
        %v646 = vadd.f32 0.0, %v645
        %647 = vdwg.mxu0
        %v648 = vadd.f32 %v608, %v643
        %v649 = vadd.f32 %v609, %v646
        %s650 = scalar_lea.vmem %s1, 32
        %v651 = vld [vmem:[%s650] sm:$0xf]
        %v652 = vrot.slane %v571, 2
        %v653 = vrot.slane %v572, 2
        %v654 = vsel %vm409, %v652, %v653
        %v655 = vrot.slane %v573, 2
        %v656 = vsel %vm409, %v653, %v655
        %v657 = vsel %vm345, %v654, 0
        %v659 = vsel %vm345, %v656, 0
        %v662 = vsel %vm350, %v651, 0
        %664 = vmatpush.msra.mxu0 0.0
        %665 = vmatpush.msra.mxu0 0.0
        %666 = vmatpush.msra.mxu0 0.0
        %667 = vmatpush.msra.mxu0 0.0
        %668 = vmatpush.msra.mxu0 0.0
        %669 = vmatpush.msra.mxu0 0.0
        %670 = vmatpush.msra.mxu0 0.0
        %671 = vmatpush.msra.mxu0 0.0
        %672 = vmatpush.msra.mxu0 0.0
        %673 = vmatpush.msra.mxu0 0.0
        %674 = vmatpush.msra.mxu0 0.0
        %675 = vmatpush.msra.mxu0 0.0
        %676 = vmatpush.msra.mxu0 0.0
        %677 = vmatpush.msra.mxu0 0.0
        %678 = vmatpush.msra.mxu0 0.0
        %679 = vmatpush.msra.mxu0 %v662
        %680 = vmatmul.f32.gmra.mxu0 %v657
        %v681 = vpop.f32.mrf.mxu0
        %v682 = vadd.f32 0.0, %v681
        %683 = vmatmul.f32.gmra.mxu0 %v659
        %v684 = vpop.f32.mrf.mxu0
        %v685 = vadd.f32 0.0, %v684
        %686 = vdwg.mxu0
        %v687 = vadd.f32 %v648, %v682
        %v688 = vadd.f32 %v649, %v685
        %v690 = vperm.slane %v318, 0
        %v692 = vmul.f32 %v687, %v690
        %v693 = vmul.f32 %v688, %v690
        %v695 = vperm.slane %v319, 0
        %v697 = vadd.f32 %v692, %v695
        %v698 = vadd.f32 %v693, %v695
        %v699 = vmax.f32 %v697, 0.0
        %v700 = vmax.f32 %v698, 0.0
        %v702 = vrot.slane %v699, 1
        %vm705 = vcmask 1040384
        %v706 = vrot.slane %v699, 7
        %v707 = vrot.slane %v700, 7
        %v708 = vsel %vm705, %v706, %v707
        %v712 = vrot.slane %v700, 5
        %v714 = vsel %vm705, %v702, %v706
        %v715 = vsel %vm705, %v707, %v712
        %s716 = scalar_lea.vmem [#allocation3], %s448
        %717 = vst.msk [vmem:[%s716] sm:$0xff] %vm345, %v714
        %718 = vst.msk [vmem:[%s716 + $0x8] sm:$0xff] %vm345, %v708
        %vm719 = vcmask 25600
        %720 = vst.msk [vmem:[%s716 + $0x10] sm:$0x3] %vm719, %v715
      $region60: #{tpu_custom_call.1} parent=47 // loop_footer
        %s327 = sadd.s32 1, %s323
      $region61: #{tpu_custom_call.1} parent=47 // loop_footer_branch
        %322 = sbr.rel target = $region57
      $region62: #{tpu_custom_call.1} parent=47 // loop_exit
        _
      %s721 = scalar_lea.vmem [#allocation3], 48
      %v722 = vld [vmem:[%s721] sm:$0xff]
      %v723 = vld [vmem:[%s721 + $0x8] sm:$0xff]
      %v724 = vld [vmem:[%s721 + $0x10] sm:$0x3]
      %vm725 = vcmask 31744
      %726 = vst.msk [vmem:[#allocation3] sm:$0xff] %vm725, %v722
      %727 = vst.msk [vmem:[#allocation3 + $0x8] sm:$0xff] %vm725, %v723
      %vm728 = vcmask 25600
      %729 = vst.msk [vmem:[#allocation3 + $0x10] sm:$0x3] %vm728, %v724
      %s730 = scalar_lea.vmem [#allocation3], 360
      %v731 = vld [vmem:[%s730] sm:$0xff]
      %v732 = vld [vmem:[%s730 + $0x8] sm:$0xff]
      %v733 = vld [vmem:[%s730 + $0x10] sm:$0x3]
      %s734 = scalar_lea.vmem [#allocation3], 408
      %735 = vst.msk [vmem:[%s734] sm:$0xff] %vm725, %v731
      %736 = vst.msk [vmem:[%s734 + $0x8] sm:$0xff] %vm725, %v732
      %737 = vst.msk [vmem:[%s734 + $0x10] sm:$0x3] %vm728, %v733
      loop: start=0, step=1, limit=16
      $region63: #{tpu_custom_call.1} parent=47 // loop_pre_header
        _
      $region64: #{tpu_custom_call.1} parent=47 // loop_header
        %s739 = sphi 0, %s743
        %p740 = scmp.ge.s32.totalorder %s739, 16
      $region65: #{tpu_custom_call.1} parent=47 // loop_header_branch
        %742 = sbr.rel (%p740) target = $region69
      $region66: #{tpu_custom_call.1} parent=47 // loop_body
        %s744 = smul.u32 %s739, 24
        %s745 = scalar_lea.vmem [#allocation3], %s744
        %v746 = vld [vmem:[%s745] sm:$0xff]
        %v747 = vld [vmem:[%s745 + $0x8] sm:$0xff]
        %v748 = vld [vmem:[%s745 + $0x10] sm:$0x3]
        %v749 = vld [vmem:[%s2] sm:$0xf]
        %s750 = scalar_lea.vmem %s2, 4
        %v751 = vld [vmem:[%s750] sm:$0xf]
        %vm755 = vcmask 1046528
        %v756 = vrot.slane %v746, 1
        %v757 = vrot.slane %v747, 1
        %v758 = vsel %vm755, %v756, %v757
        %v759 = vrot.slane %v748, 1
        %v760 = vsel %vm755, %v757, %v759
        %v761 = vsel %vm725, %v758, 0
        %v763 = vsel %vm725, %v760, 0
        %vm765 = vcmask 1043456
        %v767 = vsel %vm765, %v751, 0
        %769 = vmatpush.msra.mxu0 0.0
        %770 = vmatpush.msra.mxu0 0.0
        %771 = vmatpush.msra.mxu0 0.0
        %772 = vmatpush.msra.mxu0 0.0
        %773 = vmatpush.msra.mxu0 0.0
        %774 = vmatpush.msra.mxu0 0.0
        %775 = vmatpush.msra.mxu0 0.0
        %776 = vmatpush.msra.mxu0 0.0
        %777 = vmatpush.msra.mxu0 0.0
        %778 = vmatpush.msra.mxu0 0.0
        %779 = vmatpush.msra.mxu0 0.0
        %780 = vmatpush.msra.mxu0 0.0
        %781 = vmatpush.msra.mxu0 0.0
        %782 = vmatpush.msra.mxu0 0.0
        %783 = vmatpush.msra.mxu0 0.0
        %784 = vmatpush.msra.mxu0 %v767
        %785 = vmatmul.f32.gmra.mxu0 %v761
        %v786 = vpop.f32.mrf.mxu0
        %v787 = vadd.f32 0.0, %v786
        %788 = vmatmul.f32.gmra.mxu0 %v763
        %v789 = vpop.f32.mrf.mxu0
        %v790 = vadd.f32 0.0, %v789
        %791 = vdwg.mxu0
        %v792 = vsel %vm725, %v746, 0
        %v794 = vsel %vm725, %v747, 0
        %v797 = vsel %vm765, %v749, 0
        %799 = vmatpush.msra.mxu0 0.0
        %800 = vmatpush.msra.mxu0 0.0
        %801 = vmatpush.msra.mxu0 0.0
        %802 = vmatpush.msra.mxu0 0.0
        %803 = vmatpush.msra.mxu0 0.0
        %804 = vmatpush.msra.mxu0 0.0
        %805 = vmatpush.msra.mxu0 0.0
        %806 = vmatpush.msra.mxu0 0.0
        %807 = vmatpush.msra.mxu0 0.0
        %808 = vmatpush.msra.mxu0 0.0
        %809 = vmatpush.msra.mxu0 0.0
        %810 = vmatpush.msra.mxu0 0.0
        %811 = vmatpush.msra.mxu0 0.0
        %812 = vmatpush.msra.mxu0 0.0
        %813 = vmatpush.msra.mxu0 0.0
        %814 = vmatpush.msra.mxu0 %v797
        %815 = vmatmul.f32.gmra.mxu0 %v792
        %v816 = vpop.f32.mrf.mxu0
        %v817 = vadd.f32 %v787, %v816
        %818 = vmatmul.f32.gmra.mxu0 %v794
        %v819 = vpop.f32.mrf.mxu0
        %v820 = vadd.f32 %v790, %v819
        %821 = vdwg.mxu0
        %s822 = scalar_lea.vmem %s2, 8
        %v823 = vld [vmem:[%s822] sm:$0xf]
        %vm824 = vcmask 1045504
        %v825 = vrot.slane %v746, 2
        %v826 = vrot.slane %v747, 2
        %v827 = vsel %vm824, %v825, %v826
        %v828 = vrot.slane %v748, 2
        %v829 = vsel %vm824, %v826, %v828
        %v830 = vsel %vm725, %v827, 0
        %v832 = vsel %vm725, %v829, 0
        %v835 = vsel %vm765, %v823, 0
        %837 = vmatpush.msra.mxu0 0.0
        %838 = vmatpush.msra.mxu0 0.0
        %839 = vmatpush.msra.mxu0 0.0
        %840 = vmatpush.msra.mxu0 0.0
        %841 = vmatpush.msra.mxu0 0.0
        %842 = vmatpush.msra.mxu0 0.0
        %843 = vmatpush.msra.mxu0 0.0
        %844 = vmatpush.msra.mxu0 0.0
        %845 = vmatpush.msra.mxu0 0.0
        %846 = vmatpush.msra.mxu0 0.0
        %847 = vmatpush.msra.mxu0 0.0
        %848 = vmatpush.msra.mxu0 0.0
        %849 = vmatpush.msra.mxu0 0.0
        %850 = vmatpush.msra.mxu0 0.0
        %851 = vmatpush.msra.mxu0 0.0
        %852 = vmatpush.msra.mxu0 %v835
        %853 = vmatmul.f32.gmra.mxu0 %v830
        %v854 = vpop.f32.mrf.mxu0
        %v855 = vadd.f32 0.0, %v854
        %856 = vmatmul.f32.gmra.mxu0 %v832
        %v857 = vpop.f32.mrf.mxu0
        %v858 = vadd.f32 0.0, %v857
        %859 = vdwg.mxu0
        %v860 = vadd.f32 %v817, %v855
        %v861 = vadd.f32 %v820, %v858
        %s862 = sadd.s32 %s739, 1
        %s863 = smul.u32 %s862, 24
        %s864 = scalar_lea.vmem [#allocation3], %s863
        %v865 = vld [vmem:[%s864] sm:$0xff]
        %v866 = vld [vmem:[%s864 + $0x8] sm:$0xff]
        %v867 = vld [vmem:[%s864 + $0x10] sm:$0x3]
        %s868 = scalar_lea.vmem %s2, 12
        %v869 = vld [vmem:[%s868] sm:$0xf]
        %v871 = vsel %vm725, %v865, 0
        %v874 = vsel %vm725, %v866, 0
        %v877 = vsel %vm765, %v869, 0
        %879 = vmatpush.msra.mxu0 0.0
        %880 = vmatpush.msra.mxu0 0.0
        %881 = vmatpush.msra.mxu0 0.0
        %882 = vmatpush.msra.mxu0 0.0
        %883 = vmatpush.msra.mxu0 0.0
        %884 = vmatpush.msra.mxu0 0.0
        %885 = vmatpush.msra.mxu0 0.0
        %886 = vmatpush.msra.mxu0 0.0
        %887 = vmatpush.msra.mxu0 0.0
        %888 = vmatpush.msra.mxu0 0.0
        %889 = vmatpush.msra.mxu0 0.0
        %890 = vmatpush.msra.mxu0 0.0
        %891 = vmatpush.msra.mxu0 0.0
        %892 = vmatpush.msra.mxu0 0.0
        %893 = vmatpush.msra.mxu0 0.0
        %894 = vmatpush.msra.mxu0 %v877
        %895 = vmatmul.f32.gmra.mxu0 %v871
        %v896 = vpop.f32.mrf.mxu0
        %v897 = vadd.f32 0.0, %v896
        %898 = vmatmul.f32.gmra.mxu0 %v874
        %v899 = vpop.f32.mrf.mxu0
        %v900 = vadd.f32 0.0, %v899
        %901 = vdwg.mxu0
        %v902 = vadd.f32 %v860, %v897
        %v903 = vadd.f32 %v861, %v900
        %s904 = scalar_lea.vmem %s2, 16
        %v905 = vld [vmem:[%s904] sm:$0xf]
        %v907 = vrot.slane %v865, 1
        %v908 = vrot.slane %v866, 1
        %v909 = vsel %vm755, %v907, %v908
        %v910 = vrot.slane %v867, 1
        %v911 = vsel %vm755, %v908, %v910
        %v912 = vsel %vm725, %v909, 0
        %v914 = vsel %vm725, %v911, 0
        %v917 = vsel %vm765, %v905, 0
        %919 = vmatpush.msra.mxu0 0.0
        %920 = vmatpush.msra.mxu0 0.0
        %921 = vmatpush.msra.mxu0 0.0
        %922 = vmatpush.msra.mxu0 0.0
        %923 = vmatpush.msra.mxu0 0.0
        %924 = vmatpush.msra.mxu0 0.0
        %925 = vmatpush.msra.mxu0 0.0
        %926 = vmatpush.msra.mxu0 0.0
        %927 = vmatpush.msra.mxu0 0.0
        %928 = vmatpush.msra.mxu0 0.0
        %929 = vmatpush.msra.mxu0 0.0
        %930 = vmatpush.msra.mxu0 0.0
        %931 = vmatpush.msra.mxu0 0.0
        %932 = vmatpush.msra.mxu0 0.0
        %933 = vmatpush.msra.mxu0 0.0
        %934 = vmatpush.msra.mxu0 %v917
        %935 = vmatmul.f32.gmra.mxu0 %v912
        %v936 = vpop.f32.mrf.mxu0
        %v937 = vadd.f32 0.0, %v936
        %938 = vmatmul.f32.gmra.mxu0 %v914
        %v939 = vpop.f32.mrf.mxu0
        %v940 = vadd.f32 0.0, %v939
        %941 = vdwg.mxu0
        %v942 = vadd.f32 %v902, %v937
        %v943 = vadd.f32 %v903, %v940
        %s944 = scalar_lea.vmem %s2, 20
        %v945 = vld [vmem:[%s944] sm:$0xf]
        %v946 = vrot.slane %v865, 2
        %v947 = vrot.slane %v866, 2
        %v948 = vsel %vm824, %v946, %v947
        %v949 = vrot.slane %v867, 2
        %v950 = vsel %vm824, %v947, %v949
        %v951 = vsel %vm725, %v948, 0
        %v953 = vsel %vm725, %v950, 0
        %v956 = vsel %vm765, %v945, 0
        %958 = vmatpush.msra.mxu0 0.0
        %959 = vmatpush.msra.mxu0 0.0
        %960 = vmatpush.msra.mxu0 0.0
        %961 = vmatpush.msra.mxu0 0.0
        %962 = vmatpush.msra.mxu0 0.0
        %963 = vmatpush.msra.mxu0 0.0
        %964 = vmatpush.msra.mxu0 0.0
        %965 = vmatpush.msra.mxu0 0.0
        %966 = vmatpush.msra.mxu0 0.0
        %967 = vmatpush.msra.mxu0 0.0
        %968 = vmatpush.msra.mxu0 0.0
        %969 = vmatpush.msra.mxu0 0.0
        %970 = vmatpush.msra.mxu0 0.0
        %971 = vmatpush.msra.mxu0 0.0
        %972 = vmatpush.msra.mxu0 0.0
        %973 = vmatpush.msra.mxu0 %v956
        %974 = vmatmul.f32.gmra.mxu0 %v951
        %v975 = vpop.f32.mrf.mxu0
        %v976 = vadd.f32 0.0, %v975
        %977 = vmatmul.f32.gmra.mxu0 %v953
        %v978 = vpop.f32.mrf.mxu0
        %v979 = vadd.f32 0.0, %v978
        %980 = vdwg.mxu0
        %v981 = vadd.f32 %v942, %v976
        %v982 = vadd.f32 %v943, %v979
        %s983 = sadd.s32 %s739, 2
        %s984 = smul.u32 %s983, 24
        %s985 = scalar_lea.vmem [#allocation3], %s984
        %v986 = vld [vmem:[%s985] sm:$0xff]
        %v987 = vld [vmem:[%s985 + $0x8] sm:$0xff]
        %v988 = vld [vmem:[%s985 + $0x10] sm:$0x3]
        %s989 = scalar_lea.vmem %s2, 24
        %v990 = vld [vmem:[%s989] sm:$0xf]
        %v992 = vsel %vm725, %v986, 0
        %v995 = vsel %vm725, %v987, 0
        %v998 = vsel %vm765, %v990, 0
        %1000 = vmatpush.msra.mxu0 0.0
        %1001 = vmatpush.msra.mxu0 0.0
        %1002 = vmatpush.msra.mxu0 0.0
        %1003 = vmatpush.msra.mxu0 0.0
        %1004 = vmatpush.msra.mxu0 0.0
        %1005 = vmatpush.msra.mxu0 0.0
        %1006 = vmatpush.msra.mxu0 0.0
        %1007 = vmatpush.msra.mxu0 0.0
        %1008 = vmatpush.msra.mxu0 0.0
        %1009 = vmatpush.msra.mxu0 0.0
        %1010 = vmatpush.msra.mxu0 0.0
        %1011 = vmatpush.msra.mxu0 0.0
        %1012 = vmatpush.msra.mxu0 0.0
        %1013 = vmatpush.msra.mxu0 0.0
        %1014 = vmatpush.msra.mxu0 0.0
        %1015 = vmatpush.msra.mxu0 %v998
        %1016 = vmatmul.f32.gmra.mxu0 %v992
        %v1017 = vpop.f32.mrf.mxu0
        %v1018 = vadd.f32 0.0, %v1017
        %1019 = vmatmul.f32.gmra.mxu0 %v995
        %v1020 = vpop.f32.mrf.mxu0
        %v1021 = vadd.f32 0.0, %v1020
        %1022 = vdwg.mxu0
        %v1023 = vadd.f32 %v981, %v1018
        %v1024 = vadd.f32 %v982, %v1021
        %s1025 = scalar_lea.vmem %s2, 28
        %v1026 = vld [vmem:[%s1025] sm:$0xf]
        %v1028 = vrot.slane %v986, 1
        %v1029 = vrot.slane %v987, 1
        %v1030 = vsel %vm755, %v1028, %v1029
        %v1031 = vrot.slane %v988, 1
        %v1032 = vsel %vm755, %v1029, %v1031
        %v1033 = vsel %vm725, %v1030, 0
        %v1035 = vsel %vm725, %v1032, 0
        %v1038 = vsel %vm765, %v1026, 0
        %1040 = vmatpush.msra.mxu0 0.0
        %1041 = vmatpush.msra.mxu0 0.0
        %1042 = vmatpush.msra.mxu0 0.0
        %1043 = vmatpush.msra.mxu0 0.0
        %1044 = vmatpush.msra.mxu0 0.0
        %1045 = vmatpush.msra.mxu0 0.0
        %1046 = vmatpush.msra.mxu0 0.0
        %1047 = vmatpush.msra.mxu0 0.0
        %1048 = vmatpush.msra.mxu0 0.0
        %1049 = vmatpush.msra.mxu0 0.0
        %1050 = vmatpush.msra.mxu0 0.0
        %1051 = vmatpush.msra.mxu0 0.0
        %1052 = vmatpush.msra.mxu0 0.0
        %1053 = vmatpush.msra.mxu0 0.0
        %1054 = vmatpush.msra.mxu0 0.0
        %1055 = vmatpush.msra.mxu0 %v1038
        %1056 = vmatmul.f32.gmra.mxu0 %v1033
        %v1057 = vpop.f32.mrf.mxu0
        %v1058 = vadd.f32 0.0, %v1057
        %1059 = vmatmul.f32.gmra.mxu0 %v1035
        %v1060 = vpop.f32.mrf.mxu0
        %v1061 = vadd.f32 0.0, %v1060
        %1062 = vdwg.mxu0
        %v1063 = vadd.f32 %v1023, %v1058
        %v1064 = vadd.f32 %v1024, %v1061
        %s1065 = scalar_lea.vmem %s2, 32
        %v1066 = vld [vmem:[%s1065] sm:$0xf]
        %v1067 = vrot.slane %v986, 2
        %v1068 = vrot.slane %v987, 2
        %v1069 = vsel %vm824, %v1067, %v1068
        %v1070 = vrot.slane %v988, 2
        %v1071 = vsel %vm824, %v1068, %v1070
        %v1072 = vsel %vm725, %v1069, 0
        %v1074 = vsel %vm725, %v1071, 0
        %v1077 = vsel %vm765, %v1066, 0
        %1079 = vmatpush.msra.mxu0 0.0
        %1080 = vmatpush.msra.mxu0 0.0
        %1081 = vmatpush.msra.mxu0 0.0
        %1082 = vmatpush.msra.mxu0 0.0
        %1083 = vmatpush.msra.mxu0 0.0
        %1084 = vmatpush.msra.mxu0 0.0
        %1085 = vmatpush.msra.mxu0 0.0
        %1086 = vmatpush.msra.mxu0 0.0
        %1087 = vmatpush.msra.mxu0 0.0
        %1088 = vmatpush.msra.mxu0 0.0
        %1089 = vmatpush.msra.mxu0 0.0
        %1090 = vmatpush.msra.mxu0 0.0
        %1091 = vmatpush.msra.mxu0 0.0
        %1092 = vmatpush.msra.mxu0 0.0
        %1093 = vmatpush.msra.mxu0 0.0
        %1094 = vmatpush.msra.mxu0 %v1077
        %1095 = vmatmul.f32.gmra.mxu0 %v1072
        %v1096 = vpop.f32.mrf.mxu0
        %v1097 = vadd.f32 0.0, %v1096
        %1098 = vmatmul.f32.gmra.mxu0 %v1074
        %v1099 = vpop.f32.mrf.mxu0
        %v1100 = vadd.f32 0.0, %v1099
        %1101 = vdwg.mxu0
        %v1102 = vadd.f32 %v1063, %v1097
        %v1103 = vadd.f32 %v1064, %v1100
        %v1105 = vperm.slane %v320, 0
        %v1107 = vmul.f32 %v1102, %v1105
        %v1108 = vmul.f32 %v1103, %v1105
        %v1110 = vperm.slane %v321, 0
        %v1112 = vadd.f32 %v1107, %v1110
        %v1113 = vadd.f32 %v1108, %v1110
        %s1114 = smul.u32 %s739, 16
        %s1115 = scalar_lea.vmem %s273, %s1114
        %v1116 = vld [vmem:[%s1115] sm:$0xff]
        %v1117 = vld [vmem:[%s1115 + $0x8] sm:$0xff]
        %v1118 = vadd.f32 %v1112, %v1116
        %v1119 = vadd.f32 %v1113, %v1117
        %s1120 = scalar_lea.vmem %s278, %s1114
        %1121 = vst.msk [vmem:[%s1120] sm:$0xff] %vm725, %v1118
        %1122 = vst.msk [vmem:[%s1120 + $0x8] sm:$0xff] %vm725, %v1119
      $region67: #{tpu_custom_call.1} parent=47 // loop_footer
        %s743 = sadd.s32 1, %s739
      $region68: #{tpu_custom_call.1} parent=47 // loop_footer_branch
        %738 = sbr.rel target = $region64
      $region69: #{tpu_custom_call.1} parent=47 // loop_exit
        _
      %p1123 = scmp.lt.s32.totalorder %s18, 1
      %s1124 = scalar_select %p1123, %s18, 1
      %s1125 = smul.addr %s1124, 32
      %s1126 = smul.addr %s1125, 8
      %s1127 = scalar_lea.vmem %s7, %s1126
      // Predicated region
      $region70: #{tpu_custom_call.1} parent=47 // pred_check
        %p1128 = pneg %p188
      $region71: #{tpu_custom_call.1} parent=47 // pred_check_branch
        %1130 = sbr.rel (%p1128) target = $region73
      $region72: #{tpu_custom_call.1} parent=47 // pred_region
        _
      $region73: #{tpu_custom_call.1} parent=47 // pred_fallthru
        _
    $region48: #{tpu_custom_call.1} parent=5 // pred_fallthru
      _
    %p1131 = scmp.le.s32.totalorder 2, %s13
    // Predicated region
    $region74: #{tpu_custom_call.1} parent=5 // pred_check
      %p1132 = pneg %p1131
    $region75: #{tpu_custom_call.1} parent=5 // pred_check_branch
      %1134 = sbr.rel (%p1132) target = $region77
    $region76: #{tpu_custom_call.1} parent=5 // pred_region
      %s1135 = ssub.s32 %s13, 2
      // Predicated region
      $region78: #{tpu_custom_call.1} parent=76 // pred_check
        %p1136 = pneg %p194
      $region79: #{tpu_custom_call.1} parent=76 // pred_check_branch
        %1138 = sbr.rel (%p1136) target = $region81
      $region80: #{tpu_custom_call.1} parent=76 // pred_region
        %p1139 = scmp.lt.s32.totalorder %s19, 1
        %s1140 = scalar_select %p1139, %s19, 1
        %s1141 = smul.addr %s1140, 32
        %s1142 = smul.addr %s1141, 8
        %s1143 = scalar_lea.vmem %s7, %s1142
      $region81: #{tpu_custom_call.1} parent=76 // pred_fallthru
        _
    $region77: #{tpu_custom_call.1} parent=5 // pred_fallthru
      _
  $region6: #{tpu_custom_call.1} parent=0 // loop_footer
    %s17 = sadd.s32 1, %s13
  $region7: #{tpu_custom_call.1} parent=0 // loop_footer_branch
    %12 = sbr.rel target = $region3
  $region8: #{tpu_custom_call.1} parent=0 // loop_exit
    _

</llo_original>
